<compile_context>
chip_gen: v6e
topology: v6e:2x2x1
jax: 0.10.0
libtpu: 0.0.40
codegen_flags: <defaults>
</compile_context>

<pallas_src>
import functools

import jax
import jax.numpy as jnp
from jax.experimental import pallas as pl
from jax.experimental.pallas import tpu as pltpu


# ----------------------------------------------------------------------------
# Helpers
# ----------------------------------------------------------------------------
def _pair(v):
    return (v, v) if isinstance(v, int) else tuple(v)


def _round_up(x, m):
    return (x + m - 1) // m * m


def _pick_co_tile(c_out):
    """Largest convenient C_out tile (multiple of 8); falls back to full C_out."""
    for t in (256, 128, 64, 32, 16, 8):
        if c_out % t == 0:
            return t
    return c_out


# ----------------------------------------------------------------------------
# Parameter construction (deterministic, mirrors Constolution2D.__init__)
# ----------------------------------------------------------------------------
def make_constolution_weight(in_channels, out_channels, kernel_size, groups=1,
                             sigma=1.0):
    """Synthesizes a constant Gaussian kernel: (C_out, C_in//groups, KH, KW)."""
    kh, kw = _pair(kernel_size)
    ys = jnp.arange(kh, dtype=jnp.float32) - (kh - 1) / 2.0
    xs = jnp.arange(kw, dtype=jnp.float32) - (kw - 1) / 2.0
    g = jnp.exp(-(ys[:, None] ** 2 + xs[None, :] ** 2) / (2.0 * sigma ** 2))
    g = g / jnp.sum(g)
    w = jnp.broadcast_to(g, (out_channels, in_channels // groups, kh, kw))
    return w.astype(jnp.float32)


# ----------------------------------------------------------------------------
# Pallas kernel: per-(batch, C_out-tile) tap-accumulated conv on the MXU
# ----------------------------------------------------------------------------
def _make_tap_kernel(tap_offsets, p_out, has_bias):
    """Builds the kernel body with static tap offsets / output width baked in."""

    def kernel(*refs):
        if has_bias:
            x_ref, w_ref, b_ref, o_ref = refs
        else:
            x_ref, w_ref, o_ref = refs
        # x_ref: (C_in, S_in)            bf16 flat padded plane of one batch elem
        # w_ref: (KH*KW, CO_TILE, C_in)  bf16 per-tap weight matrices
        # b_ref: (CO_TILE, 1)            f32
        # o_ref: (CO_TILE, p_out)        x.dtype
        acc = None
        for t, off in enumerate(tap_offsets):          # static unrolled loop
            part = jnp.dot(w_ref[t], x_ref[:, off:off + p_out],
                           preferred_element_type=jnp.float32)   # MXU, f32 acc
            acc = part if acc is None else acc + part
        if has_bias:
            acc = acc + b_ref[...]                      # VPU filler (free)
        o_ref[...] = acc.astype(o_ref.dtype)            # lane-dense store

    return kernel


# ----------------------------------------------------------------------------
# Forward pass
# ----------------------------------------------------------------------------
@functools.partial(jax.jit,
                   static_argnames=("stride", "padding", "dilation", "groups"))
def constolution2d_forward(x, weight, bias=None, stride=1, padding=1,
                           dilation=1, groups=1):
    """Forward of Constolution2D. x: (N, C_in, H, W). groups=1 only."""
    if groups != 1:
        # TODO(synk): groups>1 / depthwise path changes the contraction layout.
        raise NotImplementedError("groups > 1 not implemented")

    n, c_in, h, w = x.shape
    c_out, c_in_w, kh, kw = weight.shape
    assert c_in_w == c_in
    sh, sw = _pair(stride)
    ph, pw = _pair(padding)
    dh, dw = _pair(dilation)

    h_pad, w_pad = h + 2 * ph, w + 2 * pw
    ho = h_pad - dh * (kh - 1)          # dense (stride-1) output height
    wo = w_pad - dw * (kw - 1)          # dense (stride-1) output width

    # --- input: pad, flatten spatial, bf16 stream, lane cushion ---------------
    x_flat = jnp.pad(x, ((0, 0), (0, 0), (ph, ph), (pw, pw))).astype(jnp.bfloat16)
    x_flat = x_flat.reshape(n, c_in, h_pad * w_pad)

    p_wide = ho * w_pad                         # dense output at padded row pitch
    p_out = _round_up(p_wide, 128)              # lane-dense -> unmasked stores
    off_max = (kh - 1) * dh * w_pad + (kw - 1) * dw
    s_in = p_out + off_max                      # covers the largest tap offset
    x_flat = jnp.pad(x_flat, ((0, 0), (0, 0), (0, s_in - h_pad * w_pad)))

    # --- weight: per-tap (C_out, C_in) matrices, bf16 -------------------------
    w_taps = jnp.transpose(weight, (2, 3, 0, 1)).reshape(kh * kw, c_out, c_in)
    w_taps = w_taps.astype(jnp.bfloat16)
    tap_offsets = tuple(i * dh * w_pad + j * dw
                        for i in range(kh) for j in range(kw))

    co_tile = _pick_co_tile(c_out)
    grid = (n, c_out // co_tile)
    has_bias = bias is not None
    kernel = _make_tap_kernel(tap_offsets, p_out, has_bias)

    in_specs = [
        pl.BlockSpec((None, c_in, s_in), lambda b, co: (b, 0, 0)),
        pl.BlockSpec((kh * kw, co_tile, c_in), lambda b, co: (0, co, 0)),
    ]
    inputs = [x_flat, w_taps]
    if has_bias:
        in_specs.append(pl.BlockSpec((co_tile, 1), lambda b, co: (co, 0)))
        inputs.append(bias.reshape(c_out, 1).astype(jnp.float32))
    out_spec = pl.BlockSpec((None, co_tile, p_out), lambda b, co: (b, co, 0))

    # --- VMEM budget (v7x has only 64 MiB physical VMEM) ----------------------
    out_bytes = jnp.dtype(x.dtype).itemsize
    blk_bytes = (2 * (c_in * s_in * 2)                 # x block, double-buffered
                 + 2 * (co_tile * p_out * out_bytes)   # out block, double-buffered
                 + 2 * (kh * kw * co_tile * c_in * 2)  # weight block
                 + co_tile * p_out * 4                 # f32 accumulator
                 + (1 << 20))                          # headroom
    vmem_limit = int(min(max(blk_bytes, 32 << 20), 64 << 20))

    cost = pl.CostEstimate(
        flops=2 * n * c_out * c_in * kh * kw * p_out,
        transcendentals=0,
        bytes_accessed=(x_flat.size * 2 + w_taps.size * 2
                        + n * c_out * p_out * out_bytes + c_out * 4),
    )

    out_wide = pl.pallas_call(
        kernel,
        out_shape=jax.ShapeDtypeStruct((n, c_out, p_out), x.dtype),
        grid=grid,
        in_specs=in_specs,
        out_specs=out_spec,
        compiler_params=pltpu.CompilerParams(
            dimension_semantics=("parallel", "parallel"),
            vmem_limit_bytes=vmem_limit),
        cost_estimate=cost,
    )(*inputs)

    # Crop the padded-pitch garbage columns and the lane padding.
    out = out_wide[:, :, :p_wide].reshape(n, c_out, ho, w_pad)[:, :, :, :wo]
    if sh != 1 or sw != 1:
        # TODO(synk): stride>1 currently computes the dense conv and subsamples
        # (correct but ~stride^2 extra FLOPs); a strided fused path would avoid it.
        out = out[:, :, ::sh, ::sw]
    return out


# ----------------------------------------------------------------------------
# Example / self-check
# ----------------------------------------------------------------------------
if __name__ == "__main__":
    N, C_IN, C_OUT, H, W = 2, 4, 8, 16, 16
    KSIZE, STRIDE, PADDING, DILATION = 3, 1, 1, 1

    key = jax.random.PRNGKey(0)
    x = jax.random.normal(key, (N, C_IN, H, W), dtype=jnp.float32)

    weight = make_constolution_weight(C_IN, C_OUT, KSIZE)   # fixed constant kernel
    bias = jnp.zeros((C_OUT,), dtype=jnp.float32)           # bias=True -> zeros

    out = constolution2d_forward(x, weight, bias,
                                 stride=STRIDE, padding=PADDING,
                                 dilation=DILATION)
    out = jax.block_until_ready(out)

    # Reference with the same bf16-rounded streams (kernel accumulates in f32).
    x_q = x.astype(jnp.bfloat16).astype(jnp.float32)
    w_q = weight.astype(jnp.bfloat16).astype(jnp.float32)
    ref = jax.lax.conv_general_dilated(
        x_q, w_q,
        window_strides=(STRIDE, STRIDE),
        padding=((PADDING, PADDING), (PADDING, PADDING)),
        rhs_dilation=(DILATION, DILATION),
        dimension_numbers=("NCHW", "OIHW", "NCHW"),
        precision=jax.lax.Precision.HIGHEST,
    ) + bias[None, :, None, None]

    assert out.shape == (N, C_OUT, H, W), out.shape
    max_err = float(jnp.max(jnp.abs(out - ref)))
    assert jnp.allclose(out, ref, atol=2e-3, rtol=2e-3), max_err

    print("KERNEL_OK")
</pallas_src>

<mosaic_0001>
module attributes {stable_mosaic.version = 11 : i64} {
  func.func @kernel(%arg0: i32, %arg1: i32, %arg2: memref<1x4x422xbf16, #tpu.memory_space<vmem>>, %arg3: memref<9x8x4xbf16, #tpu.memory_space<vmem>>, %arg4: memref<8x1xf32, #tpu.memory_space<vmem>>, %arg5: memref<1x8x384xf32, #tpu.memory_space<vmem>>) attributes {dimension_semantics = [#tpu.dimension_semantics<parallel>, #tpu.dimension_semantics<parallel>], iteration_bounds = array<i64: 2, 1>, scalar_prefetch = 0 : i64, scratch_operands = 0 : i64, tpu.core_type = #tpu.core_type<tc>, window_params = [{transform_indices = @transform_0, window_bounds = array<i64: 1, 4, 422>}, {transform_indices = @transform_1, window_bounds = array<i64: 9, 8, 4>}, {transform_indices = @transform_2, window_bounds = array<i64: 8, 1>}, {transform_indices = @transform_3, window_bounds = array<i64: 1, 8, 384>}]} {
    %c0 = arith.constant 0 : index
    %c0_0 = arith.constant 0 : index
    %c0_1 = arith.constant 0 : index
    %0 = vector.load %arg3[%c0, %c0_0, %c0_1] : memref<9x8x4xbf16, #tpu.memory_space<vmem>>, vector<1x8x4xbf16>
    %1 = vector.shape_cast %0 : vector<1x8x4xbf16> to vector<8x4xbf16>
    %c0_2 = arith.constant 0 : index
    %c0_3 = arith.constant 0 : index
    %c0_4 = arith.constant 0 : index
    %2 = vector.load %arg2[%c0_2, %c0_3, %c0_4] : memref<1x4x422xbf16, #tpu.memory_space<vmem>>, vector<1x4x384xbf16>
    %3 = vector.shape_cast %2 : vector<1x4x384xbf16> to vector<4x384xbf16>
    %cst = arith.constant dense<0.000000e+00> : vector<8x384xf32>
    %4 = tpu.matmul %1, %3, %cst {dimension_numbers = #tpu.dot_dimension_numbers<[1], [0], [0], [1], [0, 0, 1, 1], [], []>} : vector<8x4xbf16>, vector<4x384xbf16>, vector<8x384xf32> -> vector<8x384xf32>
    %c1 = arith.constant 1 : index
    %c0_5 = arith.constant 0 : index
    %c0_6 = arith.constant 0 : index
    %5 = vector.load %arg3[%c1, %c0_5, %c0_6] : memref<9x8x4xbf16, #tpu.memory_space<vmem>>, vector<1x8x4xbf16>
    %6 = vector.shape_cast %5 : vector<1x8x4xbf16> to vector<8x4xbf16>
    %c0_7 = arith.constant 0 : index
    %c0_8 = arith.constant 0 : index
    %c1_9 = arith.constant 1 : index
    %7 = vector.load %arg2[%c0_7, %c0_8, %c1_9] : memref<1x4x422xbf16, #tpu.memory_space<vmem>>, vector<1x4x384xbf16>
    %8 = vector.shape_cast %7 : vector<1x4x384xbf16> to vector<4x384xbf16>
    %cst_10 = arith.constant dense<0.000000e+00> : vector<8x384xf32>
    %9 = tpu.matmul %6, %8, %cst_10 {dimension_numbers = #tpu.dot_dimension_numbers<[1], [0], [0], [1], [0, 0, 1, 1], [], []>} : vector<8x4xbf16>, vector<4x384xbf16>, vector<8x384xf32> -> vector<8x384xf32>
    %10 = arith.addf %4, %9 : vector<8x384xf32>
    %c2 = arith.constant 2 : index
    %c0_11 = arith.constant 0 : index
    %c0_12 = arith.constant 0 : index
    %11 = vector.load %arg3[%c2, %c0_11, %c0_12] : memref<9x8x4xbf16, #tpu.memory_space<vmem>>, vector<1x8x4xbf16>
    %12 = vector.shape_cast %11 : vector<1x8x4xbf16> to vector<8x4xbf16>
    %c0_13 = arith.constant 0 : index
    %c0_14 = arith.constant 0 : index
    %c2_15 = arith.constant 2 : index
    %13 = vector.load %arg2[%c0_13, %c0_14, %c2_15] : memref<1x4x422xbf16, #tpu.memory_space<vmem>>, vector<1x4x384xbf16>
    %14 = vector.shape_cast %13 : vector<1x4x384xbf16> to vector<4x384xbf16>
    %cst_16 = arith.constant dense<0.000000e+00> : vector<8x384xf32>
    %15 = tpu.matmul %12, %14, %cst_16 {dimension_numbers = #tpu.dot_dimension_numbers<[1], [0], [0], [1], [0, 0, 1, 1], [], []>} : vector<8x4xbf16>, vector<4x384xbf16>, vector<8x384xf32> -> vector<8x384xf32>
    %16 = arith.addf %10, %15 : vector<8x384xf32>
    %c3 = arith.constant 3 : index
    %c0_17 = arith.constant 0 : index
    %c0_18 = arith.constant 0 : index
    %17 = vector.load %arg3[%c3, %c0_17, %c0_18] : memref<9x8x4xbf16, #tpu.memory_space<vmem>>, vector<1x8x4xbf16>
    %18 = vector.shape_cast %17 : vector<1x8x4xbf16> to vector<8x4xbf16>
    %c0_19 = arith.constant 0 : index
    %c0_20 = arith.constant 0 : index
    %c18 = arith.constant 18 : index
    %19 = vector.load %arg2[%c0_19, %c0_20, %c18] : memref<1x4x422xbf16, #tpu.memory_space<vmem>>, vector<1x4x384xbf16>
    %20 = vector.shape_cast %19 : vector<1x4x384xbf16> to vector<4x384xbf16>
    %cst_21 = arith.constant dense<0.000000e+00> : vector<8x384xf32>
    %21 = tpu.matmul %18, %20, %cst_21 {dimension_numbers = #tpu.dot_dimension_numbers<[1], [0], [0], [1], [0, 0, 1, 1], [], []>} : vector<8x4xbf16>, vector<4x384xbf16>, vector<8x384xf32> -> vector<8x384xf32>
    %22 = arith.addf %16, %21 : vector<8x384xf32>
    %c4 = arith.constant 4 : index
    %c0_22 = arith.constant 0 : index
    %c0_23 = arith.constant 0 : index
    %23 = vector.load %arg3[%c4, %c0_22, %c0_23] : memref<9x8x4xbf16, #tpu.memory_space<vmem>>, vector<1x8x4xbf16>
    %24 = vector.shape_cast %23 : vector<1x8x4xbf16> to vector<8x4xbf16>
    %c0_24 = arith.constant 0 : index
    %c0_25 = arith.constant 0 : index
    %c19 = arith.constant 19 : index
    %25 = vector.load %arg2[%c0_24, %c0_25, %c19] : memref<1x4x422xbf16, #tpu.memory_space<vmem>>, vector<1x4x384xbf16>
    %26 = vector.shape_cast %25 : vector<1x4x384xbf16> to vector<4x384xbf16>
    %cst_26 = arith.constant dense<0.000000e+00> : vector<8x384xf32>
    %27 = tpu.matmul %24, %26, %cst_26 {dimension_numbers = #tpu.dot_dimension_numbers<[1], [0], [0], [1], [0, 0, 1, 1], [], []>} : vector<8x4xbf16>, vector<4x384xbf16>, vector<8x384xf32> -> vector<8x384xf32>
    %28 = arith.addf %22, %27 : vector<8x384xf32>
    %c5 = arith.constant 5 : index
    %c0_27 = arith.constant 0 : index
    %c0_28 = arith.constant 0 : index
    %29 = vector.load %arg3[%c5, %c0_27, %c0_28] : memref<9x8x4xbf16, #tpu.memory_space<vmem>>, vector<1x8x4xbf16>
    %30 = vector.shape_cast %29 : vector<1x8x4xbf16> to vector<8x4xbf16>
    %c0_29 = arith.constant 0 : index
    %c0_30 = arith.constant 0 : index
    %c20 = arith.constant 20 : index
    %31 = vector.load %arg2[%c0_29, %c0_30, %c20] : memref<1x4x422xbf16, #tpu.memory_space<vmem>>, vector<1x4x384xbf16>
    %32 = vector.shape_cast %31 : vector<1x4x384xbf16> to vector<4x384xbf16>
    %cst_31 = arith.constant dense<0.000000e+00> : vector<8x384xf32>
    %33 = tpu.matmul %30, %32, %cst_31 {dimension_numbers = #tpu.dot_dimension_numbers<[1], [0], [0], [1], [0, 0, 1, 1], [], []>} : vector<8x4xbf16>, vector<4x384xbf16>, vector<8x384xf32> -> vector<8x384xf32>
    %34 = arith.addf %28, %33 : vector<8x384xf32>
    %c6 = arith.constant 6 : index
    %c0_32 = arith.constant 0 : index
    %c0_33 = arith.constant 0 : index
    %35 = vector.load %arg3[%c6, %c0_32, %c0_33] : memref<9x8x4xbf16, #tpu.memory_space<vmem>>, vector<1x8x4xbf16>
    %36 = vector.shape_cast %35 : vector<1x8x4xbf16> to vector<8x4xbf16>
    %c0_34 = arith.constant 0 : index
    %c0_35 = arith.constant 0 : index
    %c36 = arith.constant 36 : index
    %37 = vector.load %arg2[%c0_34, %c0_35, %c36] : memref<1x4x422xbf16, #tpu.memory_space<vmem>>, vector<1x4x384xbf16>
    %38 = vector.shape_cast %37 : vector<1x4x384xbf16> to vector<4x384xbf16>
    %cst_36 = arith.constant dense<0.000000e+00> : vector<8x384xf32>
    %39 = tpu.matmul %36, %38, %cst_36 {dimension_numbers = #tpu.dot_dimension_numbers<[1], [0], [0], [1], [0, 0, 1, 1], [], []>} : vector<8x4xbf16>, vector<4x384xbf16>, vector<8x384xf32> -> vector<8x384xf32>
    %40 = arith.addf %34, %39 : vector<8x384xf32>
    %c7 = arith.constant 7 : index
    %c0_37 = arith.constant 0 : index
    %c0_38 = arith.constant 0 : index
    %41 = vector.load %arg3[%c7, %c0_37, %c0_38] : memref<9x8x4xbf16, #tpu.memory_space<vmem>>, vector<1x8x4xbf16>
    %42 = vector.shape_cast %41 : vector<1x8x4xbf16> to vector<8x4xbf16>
    %c0_39 = arith.constant 0 : index
    %c0_40 = arith.constant 0 : index
    %c37 = arith.constant 37 : index
    %43 = vector.load %arg2[%c0_39, %c0_40, %c37] : memref<1x4x422xbf16, #tpu.memory_space<vmem>>, vector<1x4x384xbf16>
    %44 = vector.shape_cast %43 : vector<1x4x384xbf16> to vector<4x384xbf16>
    %cst_41 = arith.constant dense<0.000000e+00> : vector<8x384xf32>
    %45 = tpu.matmul %42, %44, %cst_41 {dimension_numbers = #tpu.dot_dimension_numbers<[1], [0], [0], [1], [0, 0, 1, 1], [], []>} : vector<8x4xbf16>, vector<4x384xbf16>, vector<8x384xf32> -> vector<8x384xf32>
    %46 = arith.addf %40, %45 : vector<8x384xf32>
    %c8 = arith.constant 8 : index
    %c0_42 = arith.constant 0 : index
    %c0_43 = arith.constant 0 : index
    %47 = vector.load %arg3[%c8, %c0_42, %c0_43] : memref<9x8x4xbf16, #tpu.memory_space<vmem>>, vector<1x8x4xbf16>
    %48 = vector.shape_cast %47 : vector<1x8x4xbf16> to vector<8x4xbf16>
    %c0_44 = arith.constant 0 : index
    %c0_45 = arith.constant 0 : index
    %c38 = arith.constant 38 : index
    %49 = vector.load %arg2[%c0_44, %c0_45, %c38] : memref<1x4x422xbf16, #tpu.memory_space<vmem>>, vector<1x4x384xbf16>
    %50 = vector.shape_cast %49 : vector<1x4x384xbf16> to vector<4x384xbf16>
    %cst_46 = arith.constant dense<0.000000e+00> : vector<8x384xf32>
    %51 = tpu.matmul %48, %50, %cst_46 {dimension_numbers = #tpu.dot_dimension_numbers<[1], [0], [0], [1], [0, 0, 1, 1], [], []>} : vector<8x4xbf16>, vector<4x384xbf16>, vector<8x384xf32> -> vector<8x384xf32>
    %52 = arith.addf %46, %51 : vector<8x384xf32>
    %c0_47 = arith.constant 0 : index
    %c0_48 = arith.constant 0 : index
    %53 = vector.load %arg4[%c0_47, %c0_48] : memref<8x1xf32, #tpu.memory_space<vmem>>, vector<8x1xf32>
    %54 = vector.broadcast %53 : vector<8x1xf32> to vector<8x384xf32>
    %55 = arith.addf %52, %54 : vector<8x384xf32>
    %c0_49 = arith.constant 0 : index
    %c0_50 = arith.constant 0 : index
    %c0_51 = arith.constant 0 : index
    %56 = vector.load %arg5[%c0_49, %c0_50, %c0_51] : memref<1x8x384xf32, #tpu.memory_space<vmem>>, vector<1x8x384xf32>
    %57 = vector.shape_cast %56 : vector<1x8x384xf32> to vector<8x384xf32>
    %58 = vector.shape_cast %55 : vector<8x384xf32> to vector<1x8x384xf32>
    tpu.vector_store %arg5[%c0_49, %c0_50, %c0_51], %58 {strides = array<i32>} : memref<1x8x384xf32, #tpu.memory_space<vmem>>, vector<1x8x384xf32>,
    return
  }
  func.func @transform_0(%arg0: i32, %arg1: i32) -> (i32, i32, i32) {
    %c0_i32 = arith.constant 0 : i32
    %c0_i32_0 = arith.constant 0 : i32
    %c0_i32_1 = arith.constant 0 : i32
    return %arg0, %c0_i32, %c0_i32_0 : i32, i32, i32
  }
  func.func @transform_1(%arg0: i32, %arg1: i32) -> (i32, i32, i32) {
    %c0_i32 = arith.constant 0 : i32
    %c0_i32_0 = arith.constant 0 : i32
    %c0_i32_1 = arith.constant 0 : i32
    return %c0_i32, %arg1, %c0_i32_0 : i32, i32, i32
  }
  func.func @transform_2(%arg0: i32, %arg1: i32) -> (i32, i32) {
    %c0_i32 = arith.constant 0 : i32
    %c0_i32_0 = arith.constant 0 : i32
    return %arg1, %c0_i32 : i32, i32
  }
  func.func @transform_3(%arg0: i32, %arg1: i32) -> (i32, i32, i32) {
    %c0_i32 = arith.constant 0 : i32
    %c0_i32_0 = arith.constant 0 : i32
    return %arg0, %arg1, %c0_i32 : i32, i32, i32
  }
}

</mosaic_0001>

<llo_original>
// kernel: constolution2d_forward.1
$region0: #{constolution2d_forward.1}
  #allocation0 [shape = 'u32[]', space=smem, size = 0x4, offset = 0x4, fixed_abs, tag = 'smem constant byte address 0x4 - core index']
  #allocation1 [shape = 'u32[144,128]{1,0:T(1,128)}', space=vmem, size = 0x12000, scoped, tag = 'internal scratch']
  %s0 = inlined_call_operand.vmem [shape: bf16[2,4,422], index: 0, kind: input, shape index: {}]
  %s1 = inlined_call_operand.vmem [shape: bf16[9,8,4], index: 1, kind: input, shape index: {}]
  %s2 = inlined_call_operand.vmem [shape: f32[8,1], index: 2, kind: input, shape index: {}]
  %s3 = inlined_call_operand.vmem [shape: f32[2,8,384], index: 3, kind: output, shape index: {}]
  %s4 = sld [smem:[#allocation0]]
  $region45: #{constolution2d_forward.1} parent=0
    _
  %s6 = ssub.s32 1, %s4
  %s7 = scalar_select 0, %s6, %s4
  loop: start=0, step=1, limit=4
  $region2: #{constolution2d_forward.1} parent=0 // loop_pre_header
    _
  $region3: #{constolution2d_forward.1} parent=0 // loop_header
    %s9 = sphi 0, %s13
    %p10 = scmp.ge.s32.totalorder %s9, 4
    %s16 = sphi 0, %s28
    %s17 = sphi 0, %s24
    %s18 = sphi 0, %s16
    %s19 = sphi 0, %s17
    %s20 = sphi 0, %s18
    %s21 = sphi 0, %s19
    %s31 = sphi 0, %s33
    %s34 = sphi 0, %s31
    %s35 = sphi 0, %s34
    %s51 = sphi 0, %s35
    %s57 = sphi 0, %s59
    %s60 = sphi 0, %s57
    %s61 = sphi 0, %s60
    %s77 = sphi 0, %s61
    %s83 = sphi 0, %s85
    %s86 = sphi 0, %s83
    %s87 = sphi 0, %s86
    %s103 = sphi 0, %s87
    %s111 = sphi 0, %s113
    %s114 = sphi 0, %s111
    %s115 = sphi 0, %s114
    %s131 = sphi 0, %s115
  $region4: #{constolution2d_forward.1} parent=0 // loop_header_branch
    %12 = sbr.rel (%p10) target = $region8
  $region5: #{constolution2d_forward.1} parent=0 // loop_body
    %s14 = ssub.s32 %s9, 1
    %s15 = ssub.s32 %s9, 2
    %s22 = sadd.s32 1, %s17
    %p23 = scmp.ge.s32.totalorder %s22, 1
    %s24 = scalar_select %p23, 0, %s22
    %s25 = sadd.s32 1, %s16
    %s26 = scalar_select %p23, %s25, %s16
    %p27 = scmp.ge.s32.totalorder %s26, 2
    %s28 = scalar_select %p27, 0, %s26
    %s29 = ssub.s32 %s16, %s28
    %p30 = scmp.eq.s32.totalorder %s29, 0
    %s32 = sadd.s32 %s31, 1
    %s33 = scalar_select %p30, %s31, %s32
    %p36 = pneg %p30
    %p37 = scmp.eq.s32.totalorder %s9, 1
    %p38 = por %p36, %p37
    %p39 = scmp.ne.s32.totalorder %s31, %s34
    %p40 = scmp.eq.s32.totalorder %s9, 0
    %p41 = por %p39, %p40
    %p42 = scmp.ne.s32.totalorder %s31, %s34
    %p43 = scmp.eq.s32.totalorder %s14, 1
    %p44 = por %p42, %p43
    %p45 = scmp.ne.s32.totalorder %s34, %s35
    %p46 = scmp.eq.s32.totalorder %s14, 0
    %p47 = por %p45, %p46
    %p48 = scmp.ne.s32.totalorder %s34, %s35
    %p49 = scmp.eq.s32.totalorder %s15, 1
    %p50 = por %p48, %p49
    %p52 = scmp.ne.s32.totalorder %s35, %s51
    %p53 = scmp.eq.s32.totalorder %s15, 0
    %p54 = por %p52, %p53
    %s55 = ssub.s32 %s17, %s24
    %p56 = scmp.eq.s32.totalorder %s55, 0
    %s58 = sadd.s32 %s57, 1
    %s59 = scalar_select %p56, %s57, %s58
    %p62 = pneg %p56
    %p63 = scmp.eq.s32.totalorder %s9, 1
    %p64 = por %p62, %p63
    %p65 = scmp.ne.s32.totalorder %s57, %s60
    %p66 = scmp.eq.s32.totalorder %s9, 0
    %p67 = por %p65, %p66
    %p68 = scmp.ne.s32.totalorder %s57, %s60
    %p69 = scmp.eq.s32.totalorder %s14, 1
    %p70 = por %p68, %p69
    %p71 = scmp.ne.s32.totalorder %s60, %s61
    %p72 = scmp.eq.s32.totalorder %s14, 0
    %p73 = por %p71, %p72
    %p74 = scmp.ne.s32.totalorder %s60, %s61
    %p75 = scmp.eq.s32.totalorder %s15, 1
    %p76 = por %p74, %p75
    %p78 = scmp.ne.s32.totalorder %s61, %s77
    %p79 = scmp.eq.s32.totalorder %s15, 0
    %p80 = por %p78, %p79
    %s81 = ssub.s32 %s17, %s24
    %p82 = scmp.eq.s32.totalorder %s81, 0
    %s84 = sadd.s32 %s83, 1
    %s85 = scalar_select %p82, %s83, %s84
    %p88 = pneg %p82
    %p89 = scmp.eq.s32.totalorder %s9, 1
    %p90 = por %p88, %p89
    %p91 = scmp.ne.s32.totalorder %s83, %s86
    %p92 = scmp.eq.s32.totalorder %s9, 0
    %p93 = por %p91, %p92
    %p94 = scmp.ne.s32.totalorder %s83, %s86
    %p95 = scmp.eq.s32.totalorder %s14, 1
    %p96 = por %p94, %p95
    %p97 = scmp.ne.s32.totalorder %s86, %s87
    %p98 = scmp.eq.s32.totalorder %s14, 0
    %p99 = por %p97, %p98
    %p100 = scmp.ne.s32.totalorder %s86, %s87
    %p101 = scmp.eq.s32.totalorder %s15, 1
    %p102 = por %p100, %p101
    %p104 = scmp.ne.s32.totalorder %s87, %s103
    %p105 = scmp.eq.s32.totalorder %s15, 0
    %p106 = por %p104, %p105
    %s107 = ssub.s32 %s16, %s28
    %s108 = ssub.s32 %s17, %s24
    %s109 = sor.u32 %s107, %s108
    %p110 = scmp.eq.s32.totalorder %s109, 0
    %s112 = sadd.s32 %s111, 1
    %s113 = scalar_select %p110, %s111, %s112
    %p116 = pneg %p110
    %p117 = scmp.eq.s32.totalorder %s9, 1
    %p118 = por %p116, %p117
    %p119 = scmp.ne.s32.totalorder %s111, %s114
    %p120 = scmp.eq.s32.totalorder %s9, 0
    %p121 = por %p119, %p120
    %p122 = scmp.ne.s32.totalorder %s111, %s114
    %p123 = scmp.eq.s32.totalorder %s14, 1
    %p124 = por %p122, %p123
    %p125 = scmp.ne.s32.totalorder %s114, %s115
    %p126 = scmp.eq.s32.totalorder %s14, 0
    %p127 = por %p125, %p126
    %p128 = scmp.ne.s32.totalorder %s114, %s115
    %p129 = scmp.eq.s32.totalorder %s15, 1
    %p130 = por %p128, %p129
    %p132 = scmp.ne.s32.totalorder %s115, %s131
    %p133 = scmp.eq.s32.totalorder %s15, 0
    %p134 = por %p132, %p133
    %p135 = scmp.le.s32.totalorder 1, %s9
    %p136 = scmp.lt.s32.totalorder %s9, 3
    %p137 = pnand %p135, %p136
    %p138 = pneg %p137
    // Predicated region
    $region9: #{constolution2d_forward.1} parent=5 // pred_check
      _
    $region10: #{constolution2d_forward.1} parent=5 // pred_check_branch
      %140 = sbr.rel (%p137) target = $region12
    $region11: #{constolution2d_forward.1} parent=5 // pred_region
      %s141 = ssub.s32 %s9, 1
      // Predicated region
      $region13: #{constolution2d_forward.1} parent=11 // pred_check
        %p142 = pneg %p73
      $region14: #{constolution2d_forward.1} parent=11 // pred_check_branch
        %144 = sbr.rel (%p142) target = $region16
      $region15: #{constolution2d_forward.1} parent=11 // pred_region
        %p145 = scmp.lt.s32.totalorder %s19, 0
        %s146 = scalar_select %p145, %s19, 0
        %s147 = smul.addr %s146, 4
        %s148 = scalar_lea.vmem %s1, %s147
      $region16: #{constolution2d_forward.1} parent=11 // pred_fallthru
        _
      // Predicated region
      $region17: #{constolution2d_forward.1} parent=11 // pred_check
        %p149 = pneg %p99
      $region18: #{constolution2d_forward.1} parent=11 // pred_check_branch
        %151 = sbr.rel (%p149) target = $region20
      $region19: #{constolution2d_forward.1} parent=11 // pred_region
        %p152 = scmp.lt.s32.totalorder %s19, 0
        %s153 = scalar_select %p152, %s19, 0
        %s154 = smul.addr %s153, 8
        %s155 = scalar_lea.vmem %s2, %s154
      $region20: #{constolution2d_forward.1} parent=11 // pred_fallthru
        _
    $region12: #{constolution2d_forward.1} parent=5 // pred_fallthru
      _
    %p156 = scmp.lt.s32.totalorder %s9, 2
    // Predicated region
    $region21: #{constolution2d_forward.1} parent=5 // pred_check
      %p157 = pneg %p156
    $region22: #{constolution2d_forward.1} parent=5 // pred_check_branch
      %159 = sbr.rel (%p157) target = $region24
    $region23: #{constolution2d_forward.1} parent=5 // pred_region
      // Predicated region
      $region25: #{constolution2d_forward.1} parent=23 // pred_check
        %p160 = pneg %p41
      $region26: #{constolution2d_forward.1} parent=23 // pred_check_branch
        %162 = sbr.rel (%p160) target = $region28
      $region27: #{constolution2d_forward.1} parent=23 // pred_region
        %p163 = scmp.lt.s32.totalorder %s16, 1
        %s164 = scalar_select %p163, %s16, 1
        %s165 = smul.addr %s164, 4
        %s166 = smul.addr %s165, 2
        %s167 = scalar_lea.vmem %s0, %s166
      $region28: #{constolution2d_forward.1} parent=23 // pred_fallthru
        _
    $region24: #{constolution2d_forward.1} parent=5 // pred_fallthru
      _
    %p168 = scmp.le.s32.totalorder 1, %s9
    %p169 = scmp.lt.s32.totalorder %s9, 3
    %p170 = pnand %p168, %p169
    %p171 = pneg %p170
    // Predicated region
    $region29: #{constolution2d_forward.1} parent=5 // pred_check
      _
    $region30: #{constolution2d_forward.1} parent=5 // pred_check_branch
      %173 = sbr.rel (%p170) target = $region32
    $region31: #{constolution2d_forward.1} parent=5 // pred_region
      %s174 = ssub.s32 %s9, 1
      %p175 = scmp.lt.s32.totalorder %s18, 1
      %s176 = scalar_select %p175, %s18, 1
      %s177 = smul.addr %s176, 4
      %s178 = smul.addr %s177, 2
      %s179 = scalar_lea.vmem %s0, %s178
      %p180 = pneg %p47
      %p181 = pneg %p44
      %p182 = scmp.lt.s32.totalorder %s19, 0
      %s183 = scalar_select %p182, %s19, 0
      %s184 = smul.addr %s183, 4
      %s185 = scalar_lea.vmem %s1, %s184
      %p186 = pneg %p73
      %p187 = pneg %p70
      %p188 = scmp.lt.s32.totalorder %s19, 0
      %s189 = scalar_select %p188, %s19, 0
      %s190 = smul.addr %s189, 8
      %s191 = scalar_lea.vmem %s2, %s190
      %p192 = pneg %p99
      %p193 = pneg %p96
      %p194 = pneg %p127
      %p195 = pneg %p124
      %p196 = scmp.lt.s32.totalorder %s18, 1
      %s197 = scalar_select %p196, %s18, 1
      %p198 = scmp.lt.s32.totalorder %s19, 0
      %s199 = scalar_select %p198, %s19, 0
      %s200 = smul.addr %s199, 3
      %s201 = smul.addr %s197, 3
      %s202 = sadd.s32 %s200, %s201
      %s203 = smul.addr %s202, 8
      %s204 = scalar_lea.vmem %s3, %s203
      %p205 = scmp.lt.s32.totalorder %s18, 1
      %s206 = scalar_select %p205, %s18, 1
      %s207 = smul.addr %s206, 4
      %s208 = smul.addr %s207, 2
      %s209 = scalar_lea.vmem %s0, %s208
      %p210 = scmp.lt.s32.totalorder %s19, 0
      %s211 = scalar_select %p210, %s19, 0
      %s212 = smul.addr %s211, 4
      %s213 = scalar_lea.vmem %s1, %s212
      %p214 = scmp.lt.s32.totalorder %s19, 0
      %s215 = scalar_select %p214, %s19, 0
      %s216 = smul.addr %s215, 8
      %s217 = scalar_lea.vmem %s2, %s216
      %p218 = scmp.lt.s32.totalorder %s18, 1
      %s219 = scalar_select %p218, %s18, 1
      %p220 = scmp.lt.s32.totalorder %s19, 0
      %s221 = scalar_select %p220, %s19, 0
      %s222 = smul.addr %s221, 3
      %s223 = smul.addr %s219, 3
      %s224 = sadd.s32 %s222, %s223
      %s225 = smul.addr %s224, 8
      %s226 = scalar_lea.vmem %s3, %s225
      %v228 = vld [vmem:[%s213] sm:$0xf]
      %v229 = vld [vmem:[%s209] sm:$0x3f]
      %s230 = scalar_lea.vmem %s213, 4
      %v231 = vld [vmem:[%s230] sm:$0xf]
      %v232 = vld [vmem:[%s209] sm:$0xff]
      %v234 = vcombine.high %v232, %v232
      %v236 = vunpack.c.l.s4 1983009808
      %v237 = vunpack.c.0.s8 %v236
      %v238 = vlaneseq
      %v239 = vshrl.u32 %v238, 7
      %v240 = vsub.s32 %v237, %v239
      %v241 = vrot.slane %v232, %v240
      %v243 = vunpack.c.l.s4 1983009808
      %v244 = vunpack.c.0.s8 %v243
      %v245 = vlaneseq
      %v246 = vshrl.u32 %v245, 7
      %v247 = vsub.s32 %v244, %v246
      %v248 = vrot.slane %v234, %v247
      %v249 = vcombine.high %v241, %v241
      %v250 = vcombine.high %v248, %v248
      %251 = vrot.lane.b32.xlu0 %v241, 127
      %v252 = vpop.permute.xlu0 %251
      %253 = vrot.lane.b32.xlu0 %v249, 127
      %v254 = vpop.permute.xlu0 %253
      %255 = vrot.lane.b32.xlu0 %v248, 127
      %v256 = vpop.permute.xlu0 %255
      %257 = vrot.lane.b32.xlu0 %v250, 127
      %v258 = vpop.permute.xlu0 %257
      %vm259 = vcmask 1039360
      %v260 = vsel %vm259, %v252, %v254
      %v261 = vsel %vm259, %v254, %v256
      %v262 = vsel %vm259, %v256, %v258
      %vm263 = vcmask 31744
      %v265 = vsel %vm263, %v231, 0
      %vm267 = vcmask 1041408
      %v269 = vsel %vm267, %v260, 0
      %v272 = vsel %vm267, %v261, 0
      %v275 = vsel %vm267, %v262, 0
      %277 = vmatprep.subr.bf16.mxu0 0
      %278 = vmatpush1.bf16.msra.mxu0 0
      %279 = vmatprep.subr.bf16.mxu0 0
      %280 = vmatpush1.bf16.msra.mxu0 0
      %281 = vmatprep.subr.bf16.mxu0 0
      %282 = vmatpush1.bf16.msra.mxu0 0
      %283 = vmatprep.subr.bf16.mxu0 0
      %284 = vmatpush1.bf16.msra.mxu0 0
      %285 = vmatprep.subr.bf16.mxu0 0
      %286 = vmatpush1.bf16.msra.mxu0 0
      %287 = vmatprep.subr.bf16.mxu0 0
      %288 = vmatpush1.bf16.msra.mxu0 0
      %289 = vmatprep.subr.bf16.mxu0 0
      %290 = vmatpush1.bf16.msra.mxu0 0
      %291 = vmatprep.subr.bf16.mxu0 %v272
      %292 = vmatpush1.bf16.msra.mxu0 %v269
      %293 = vmatprep.subr.bf16.mxu0 0
      %294 = vmatpush2.bf16.msra.mxu0 0
      %295 = vmatprep.subr.bf16.mxu0 0
      %296 = vmatpush2.bf16.msra.mxu0 0
      %297 = vmatprep.subr.bf16.mxu0 0
      %298 = vmatpush2.bf16.msra.mxu0 0
      %299 = vmatprep.subr.bf16.mxu0 0
      %300 = vmatpush2.bf16.msra.mxu0 0
      %301 = vmatprep.subr.bf16.mxu0 0
      %302 = vmatpush2.bf16.msra.mxu0 0
      %303 = vmatprep.subr.bf16.mxu0 0
      %304 = vmatpush2.bf16.msra.mxu0 0
      %305 = vmatprep.subr.bf16.mxu0 0
      %306 = vmatpush2.bf16.msra.mxu0 0
      %307 = vmatprep.subr.bf16.mxu0 0
      %308 = vmatpush2.bf16.msra.mxu0 0
      %309 = vmatprep.mubr.bf16.mxu0 0
      %310 = vmatmul.mubr.bf16.gmra.mxu0 %v265
      %v311 = vpop.f32.mrf.mxu0
      %v312 = vadd.f32 0.0, %v311
      %v313 = vpop.f32.mrf.mxu0
      %v314 = vadd.f32 0.0, %v313
      %v315 = vpop.f32.mrf.mxu0
      %v316 = vpop.f32.mrf.mxu0
      %317 = vdwg.mxu0
      %318 = vmatprep.subr.bf16.mxu0 0
      %319 = vmatpush1.bf16.msra.mxu0 0
      %320 = vmatprep.subr.bf16.mxu0 0
      %321 = vmatpush1.bf16.msra.mxu0 0
      %322 = vmatprep.subr.bf16.mxu0 0
      %323 = vmatpush1.bf16.msra.mxu0 0
      %324 = vmatprep.subr.bf16.mxu0 0
      %325 = vmatpush1.bf16.msra.mxu0 0
      %326 = vmatprep.subr.bf16.mxu0 0
      %327 = vmatpush1.bf16.msra.mxu0 0
      %328 = vmatprep.subr.bf16.mxu0 0
      %329 = vmatpush1.bf16.msra.mxu0 0
      %330 = vmatprep.subr.bf16.mxu0 0
      %331 = vmatpush1.bf16.msra.mxu0 0
      %332 = vmatprep.subr.bf16.mxu0 0
      %333 = vmatpush1.bf16.msra.mxu0 %v275
      %334 = vmatprep.subr.bf16.mxu0 0
      %335 = vmatpush2.bf16.msra.mxu0 0
      %336 = vmatprep.subr.bf16.mxu0 0
      %337 = vmatpush2.bf16.msra.mxu0 0
      %338 = vmatprep.subr.bf16.mxu0 0
      %339 = vmatpush2.bf16.msra.mxu0 0
      %340 = vmatprep.subr.bf16.mxu0 0
      %341 = vmatpush2.bf16.msra.mxu0 0
      %342 = vmatprep.subr.bf16.mxu0 0
      %343 = vmatpush2.bf16.msra.mxu0 0
      %344 = vmatprep.subr.bf16.mxu0 0
      %345 = vmatpush2.bf16.msra.mxu0 0
      %346 = vmatprep.subr.bf16.mxu0 0
      %347 = vmatpush2.bf16.msra.mxu0 0
      %348 = vmatprep.subr.bf16.mxu0 0
      %349 = vmatpush2.bf16.msra.mxu0 0
      %350 = vmatprep.mubr.bf16.mxu0 0
      %351 = vmatmul.mubr.bf16.gmra.mxu0 %v265
      %v352 = vpop.f32.mrf.mxu0
      %v353 = vadd.f32 0.0, %v352
      %v354 = vpop.f32.mrf.mxu0
      %v355 = vpop.f32.mrf.mxu0
      %v356 = vpop.f32.mrf.mxu0
      %357 = vdwg.mxu0
      %v359 = vcombine.high %v229, %v229
      %v361 = vunpack.c.l.s4 1983009808
      %v362 = vunpack.c.0.s8 %v361
      %v363 = vlaneseq
      %v364 = vshrl.u32 %v363, 7
      %v365 = vsub.s32 %v362, %v364
      %v366 = vrot.slane %v229, %v365
      %v368 = vunpack.c.l.s4 1983009808
      %v369 = vunpack.c.0.s8 %v368
      %v370 = vlaneseq
      %v371 = vshrl.u32 %v370, 7
      %v372 = vsub.s32 %v369, %v371
      %v373 = vrot.slane %v359, %v372
      %v374 = vcombine.high %v366, %v366
      %v376 = vsel %vm263, %v228, 0
      %v379 = vsel %vm267, %v366, 0
      %v382 = vsel %vm267, %v374, 0
      %v385 = vsel %vm267, %v373, 0
      %387 = vmatprep.subr.bf16.mxu0 0
      %388 = vmatpush1.bf16.msra.mxu0 0
      %389 = vmatprep.subr.bf16.mxu0 0
      %390 = vmatpush1.bf16.msra.mxu0 0
      %391 = vmatprep.subr.bf16.mxu0 0
      %392 = vmatpush1.bf16.msra.mxu0 0
      %393 = vmatprep.subr.bf16.mxu0 0
      %394 = vmatpush1.bf16.msra.mxu0 0
      %395 = vmatprep.subr.bf16.mxu0 0
      %396 = vmatpush1.bf16.msra.mxu0 0
      %397 = vmatprep.subr.bf16.mxu0 0
      %398 = vmatpush1.bf16.msra.mxu0 0
      %399 = vmatprep.subr.bf16.mxu0 0
      %400 = vmatpush1.bf16.msra.mxu0 0
      %401 = vmatprep.subr.bf16.mxu0 %v382
      %402 = vmatpush1.bf16.msra.mxu0 %v379
      %403 = vmatprep.subr.bf16.mxu0 0
      %404 = vmatpush2.bf16.msra.mxu0 0
      %405 = vmatprep.subr.bf16.mxu0 0
      %406 = vmatpush2.bf16.msra.mxu0 0
      %407 = vmatprep.subr.bf16.mxu0 0
      %408 = vmatpush2.bf16.msra.mxu0 0
      %409 = vmatprep.subr.bf16.mxu0 0
      %410 = vmatpush2.bf16.msra.mxu0 0
      %411 = vmatprep.subr.bf16.mxu0 0
      %412 = vmatpush2.bf16.msra.mxu0 0
      %413 = vmatprep.subr.bf16.mxu0 0
      %414 = vmatpush2.bf16.msra.mxu0 0
      %415 = vmatprep.subr.bf16.mxu0 0
      %416 = vmatpush2.bf16.msra.mxu0 0
      %417 = vmatprep.subr.bf16.mxu0 0
      %418 = vmatpush2.bf16.msra.mxu0 0
      %419 = vmatprep.mubr.bf16.mxu0 0
      %420 = vmatmul.mubr.bf16.gmra.mxu0 %v376
      %v421 = vpop.f32.mrf.mxu0
      %v422 = vadd.f32 %v312, %v421
      %v423 = vpop.f32.mrf.mxu0
      %v424 = vadd.f32 %v314, %v423
      %v425 = vpop.f32.mrf.mxu0
      %v426 = vpop.f32.mrf.mxu0
      %427 = vdwg.mxu0
      %428 = vmatprep.subr.bf16.mxu0 0
      %429 = vmatpush1.bf16.msra.mxu0 0
      %430 = vmatprep.subr.bf16.mxu0 0
      %431 = vmatpush1.bf16.msra.mxu0 0
      %432 = vmatprep.subr.bf16.mxu0 0
      %433 = vmatpush1.bf16.msra.mxu0 0
      %434 = vmatprep.subr.bf16.mxu0 0
      %435 = vmatpush1.bf16.msra.mxu0 0
      %436 = vmatprep.subr.bf16.mxu0 0
      %437 = vmatpush1.bf16.msra.mxu0 0
      %438 = vmatprep.subr.bf16.mxu0 0
      %439 = vmatpush1.bf16.msra.mxu0 0
      %440 = vmatprep.subr.bf16.mxu0 0
      %441 = vmatpush1.bf16.msra.mxu0 0
      %442 = vmatprep.subr.bf16.mxu0 0
      %443 = vmatpush1.bf16.msra.mxu0 %v385
      %444 = vmatprep.subr.bf16.mxu0 0
      %445 = vmatpush2.bf16.msra.mxu0 0
      %446 = vmatprep.subr.bf16.mxu0 0
      %447 = vmatpush2.bf16.msra.mxu0 0
      %448 = vmatprep.subr.bf16.mxu0 0
      %449 = vmatpush2.bf16.msra.mxu0 0
      %450 = vmatprep.subr.bf16.mxu0 0
      %451 = vmatpush2.bf16.msra.mxu0 0
      %452 = vmatprep.subr.bf16.mxu0 0
      %453 = vmatpush2.bf16.msra.mxu0 0
      %454 = vmatprep.subr.bf16.mxu0 0
      %455 = vmatpush2.bf16.msra.mxu0 0
      %456 = vmatprep.subr.bf16.mxu0 0
      %457 = vmatpush2.bf16.msra.mxu0 0
      %458 = vmatprep.subr.bf16.mxu0 0
      %459 = vmatpush2.bf16.msra.mxu0 0
      %460 = vmatprep.mubr.bf16.mxu0 0
      %461 = vmatmul.mubr.bf16.gmra.mxu0 %v376
      %v462 = vpop.f32.mrf.mxu0
      %v463 = vadd.f32 %v353, %v462
      %v464 = vpop.f32.mrf.mxu0
      %v465 = vpop.f32.mrf.mxu0
      %v466 = vpop.f32.mrf.mxu0
      %467 = vdwg.mxu0
      %s468 = scalar_lea.vmem %s213, 8
      %v469 = vld [vmem:[%s468] sm:$0xf]
      %v470 = vld [vmem:[%s209] sm:$0xff]
      %v472 = vcombine.high %v470, %v470
      %v474 = vunpack.c.l.s4 1983009808
      %v475 = vunpack.c.0.s8 %v474
      %v476 = vlaneseq
      %v477 = vshrl.u32 %v476, 7
      %v478 = vsub.s32 %v475, %v477
      %v479 = vrot.slane %v470, %v478
      %v481 = vunpack.c.l.s4 1983009808
      %v482 = vunpack.c.0.s8 %v481
      %v483 = vlaneseq
      %v484 = vshrl.u32 %v483, 7
      %v485 = vsub.s32 %v482, %v484
      %v486 = vrot.slane %v472, %v485
      %v487 = vcombine.high %v479, %v479
      %v488 = vcombine.high %v486, %v486
      %489 = vrot.lane.b32.xlu0 %v479, 126
      %v490 = vpop.permute.xlu0 %489
      %491 = vrot.lane.b32.xlu0 %v487, 126
      %v492 = vpop.permute.xlu0 %491
      %493 = vrot.lane.b32.xlu0 %v486, 126
      %v494 = vpop.permute.xlu0 %493
      %495 = vrot.lane.b32.xlu0 %v488, 126
      %v496 = vpop.permute.xlu0 %495
      %vm497 = vcmask 1031168
      %v498 = vsel %vm497, %v490, %v492
      %v499 = vsel %vm497, %v492, %v494
      %v500 = vsel %vm497, %v494, %v496
      %v502 = vsel %vm263, %v469, 0
      %v505 = vsel %vm267, %v498, 0
      %v508 = vsel %vm267, %v499, 0
      %v511 = vsel %vm267, %v500, 0
      %513 = vmatprep.subr.bf16.mxu0 0
      %514 = vmatpush1.bf16.msra.mxu0 0
      %515 = vmatprep.subr.bf16.mxu0 0
      %516 = vmatpush1.bf16.msra.mxu0 0
      %517 = vmatprep.subr.bf16.mxu0 0
      %518 = vmatpush1.bf16.msra.mxu0 0
      %519 = vmatprep.subr.bf16.mxu0 0
      %520 = vmatpush1.bf16.msra.mxu0 0
      %521 = vmatprep.subr.bf16.mxu0 0
      %522 = vmatpush1.bf16.msra.mxu0 0
      %523 = vmatprep.subr.bf16.mxu0 0
      %524 = vmatpush1.bf16.msra.mxu0 0
      %525 = vmatprep.subr.bf16.mxu0 0
      %526 = vmatpush1.bf16.msra.mxu0 0
      %527 = vmatprep.subr.bf16.mxu0 %v508
      %528 = vmatpush1.bf16.msra.mxu0 %v505
      %529 = vmatprep.subr.bf16.mxu0 0
      %530 = vmatpush2.bf16.msra.mxu0 0
      %531 = vmatprep.subr.bf16.mxu0 0
      %532 = vmatpush2.bf16.msra.mxu0 0
      %533 = vmatprep.subr.bf16.mxu0 0
      %534 = vmatpush2.bf16.msra.mxu0 0
      %535 = vmatprep.subr.bf16.mxu0 0
      %536 = vmatpush2.bf16.msra.mxu0 0
      %537 = vmatprep.subr.bf16.mxu0 0
      %538 = vmatpush2.bf16.msra.mxu0 0
      %539 = vmatprep.subr.bf16.mxu0 0
      %540 = vmatpush2.bf16.msra.mxu0 0
      %541 = vmatprep.subr.bf16.mxu0 0
      %542 = vmatpush2.bf16.msra.mxu0 0
      %543 = vmatprep.subr.bf16.mxu0 0
      %544 = vmatpush2.bf16.msra.mxu0 0
      %545 = vmatprep.mubr.bf16.mxu0 0
      %546 = vmatmul.mubr.bf16.gmra.mxu0 %v502
      %v547 = vpop.f32.mrf.mxu0
      %v548 = vadd.f32 0.0, %v547
      %v549 = vpop.f32.mrf.mxu0
      %v550 = vadd.f32 0.0, %v549
      %v551 = vpop.f32.mrf.mxu0
      %v552 = vpop.f32.mrf.mxu0
      %553 = vdwg.mxu0
      %554 = vmatprep.subr.bf16.mxu0 0
      %555 = vmatpush1.bf16.msra.mxu0 0
      %556 = vmatprep.subr.bf16.mxu0 0
      %557 = vmatpush1.bf16.msra.mxu0 0
      %558 = vmatprep.subr.bf16.mxu0 0
      %559 = vmatpush1.bf16.msra.mxu0 0
      %560 = vmatprep.subr.bf16.mxu0 0
      %561 = vmatpush1.bf16.msra.mxu0 0
      %562 = vmatprep.subr.bf16.mxu0 0
      %563 = vmatpush1.bf16.msra.mxu0 0
      %564 = vmatprep.subr.bf16.mxu0 0
      %565 = vmatpush1.bf16.msra.mxu0 0
      %566 = vmatprep.subr.bf16.mxu0 0
      %567 = vmatpush1.bf16.msra.mxu0 0
      %568 = vmatprep.subr.bf16.mxu0 0
      %569 = vmatpush1.bf16.msra.mxu0 %v511
      %570 = vmatprep.subr.bf16.mxu0 0
      %571 = vmatpush2.bf16.msra.mxu0 0
      %572 = vmatprep.subr.bf16.mxu0 0
      %573 = vmatpush2.bf16.msra.mxu0 0
      %574 = vmatprep.subr.bf16.mxu0 0
      %575 = vmatpush2.bf16.msra.mxu0 0
      %576 = vmatprep.subr.bf16.mxu0 0
      %577 = vmatpush2.bf16.msra.mxu0 0
      %578 = vmatprep.subr.bf16.mxu0 0
      %579 = vmatpush2.bf16.msra.mxu0 0
      %580 = vmatprep.subr.bf16.mxu0 0
      %581 = vmatpush2.bf16.msra.mxu0 0
      %582 = vmatprep.subr.bf16.mxu0 0
      %583 = vmatpush2.bf16.msra.mxu0 0
      %584 = vmatprep.subr.bf16.mxu0 0
      %585 = vmatpush2.bf16.msra.mxu0 0
      %586 = vmatprep.mubr.bf16.mxu0 0
      %587 = vmatmul.mubr.bf16.gmra.mxu0 %v502
      %v588 = vpop.f32.mrf.mxu0
      %v589 = vadd.f32 0.0, %v588
      %v590 = vpop.f32.mrf.mxu0
      %v591 = vpop.f32.mrf.mxu0
      %v592 = vpop.f32.mrf.mxu0
      %593 = vdwg.mxu0
      %v594 = vadd.f32 %v422, %v548
      %v595 = vadd.f32 %v424, %v550
      %v596 = vadd.f32 %v463, %v589
      %s597 = scalar_lea.vmem %s213, 12
      %v598 = vld [vmem:[%s597] sm:$0xf]
      %v599 = vld [vmem:[%s209] sm:$0xff]
      %v601 = vcombine.high %v599, %v599
      %v603 = vunpack.c.l.s4 1983009808
      %v604 = vunpack.c.0.s8 %v603
      %v605 = vlaneseq
      %v606 = vshrl.u32 %v605, 7
      %v607 = vsub.s32 %v604, %v606
      %v608 = vrot.slane %v599, %v607
      %v610 = vunpack.c.l.s4 1983009808
      %v611 = vunpack.c.0.s8 %v610
      %v612 = vlaneseq
      %v613 = vshrl.u32 %v612, 7
      %v614 = vsub.s32 %v611, %v613
      %v615 = vrot.slane %v601, %v614
      %v616 = vcombine.high %v608, %v608
      %v617 = vcombine.high %v615, %v615
      %618 = vrot.lane.b32.xlu0 %v608, 110
      %v619 = vpop.permute.xlu0 %618
      %620 = vrot.lane.b32.xlu0 %v616, 110
      %v621 = vpop.permute.xlu0 %620
      %622 = vrot.lane.b32.xlu0 %v615, 110
      %v623 = vpop.permute.xlu0 %622
      %624 = vrot.lane.b32.xlu0 %v617, 110
      %v625 = vpop.permute.xlu0 %624
      %vm626 = vcmask 900096
      %v627 = vsel %vm626, %v619, %v621
      %v628 = vsel %vm626, %v621, %v623
      %v629 = vsel %vm626, %v623, %v625
      %v631 = vsel %vm263, %v598, 0
      %v634 = vsel %vm267, %v627, 0
      %v637 = vsel %vm267, %v628, 0
      %v640 = vsel %vm267, %v629, 0
      %642 = vmatprep.subr.bf16.mxu0 0
      %643 = vmatpush1.bf16.msra.mxu0 0
      %644 = vmatprep.subr.bf16.mxu0 0
      %645 = vmatpush1.bf16.msra.mxu0 0
      %646 = vmatprep.subr.bf16.mxu0 0
      %647 = vmatpush1.bf16.msra.mxu0 0
      %648 = vmatprep.subr.bf16.mxu0 0
      %649 = vmatpush1.bf16.msra.mxu0 0
      %650 = vmatprep.subr.bf16.mxu0 0
      %651 = vmatpush1.bf16.msra.mxu0 0
      %652 = vmatprep.subr.bf16.mxu0 0
      %653 = vmatpush1.bf16.msra.mxu0 0
      %654 = vmatprep.subr.bf16.mxu0 0
      %655 = vmatpush1.bf16.msra.mxu0 0
      %656 = vmatprep.subr.bf16.mxu0 %v637
      %657 = vmatpush1.bf16.msra.mxu0 %v634
      %658 = vmatprep.subr.bf16.mxu0 0
      %659 = vmatpush2.bf16.msra.mxu0 0
      %660 = vmatprep.subr.bf16.mxu0 0
      %661 = vmatpush2.bf16.msra.mxu0 0
      %662 = vmatprep.subr.bf16.mxu0 0
      %663 = vmatpush2.bf16.msra.mxu0 0
      %664 = vmatprep.subr.bf16.mxu0 0
      %665 = vmatpush2.bf16.msra.mxu0 0
      %666 = vmatprep.subr.bf16.mxu0 0
      %667 = vmatpush2.bf16.msra.mxu0 0
      %668 = vmatprep.subr.bf16.mxu0 0
      %669 = vmatpush2.bf16.msra.mxu0 0
      %670 = vmatprep.subr.bf16.mxu0 0
      %671 = vmatpush2.bf16.msra.mxu0 0
      %672 = vmatprep.subr.bf16.mxu0 0
      %673 = vmatpush2.bf16.msra.mxu0 0
      %674 = vmatprep.mubr.bf16.mxu0 0
      %675 = vmatmul.mubr.bf16.gmra.mxu0 %v631
      %v676 = vpop.f32.mrf.mxu0
      %v677 = vadd.f32 0.0, %v676
      %v678 = vpop.f32.mrf.mxu0
      %v679 = vadd.f32 0.0, %v678
      %v680 = vpop.f32.mrf.mxu0
      %v681 = vpop.f32.mrf.mxu0
      %682 = vdwg.mxu0
      %683 = vmatprep.subr.bf16.mxu0 0
      %684 = vmatpush1.bf16.msra.mxu0 0
      %685 = vmatprep.subr.bf16.mxu0 0
      %686 = vmatpush1.bf16.msra.mxu0 0
      %687 = vmatprep.subr.bf16.mxu0 0
      %688 = vmatpush1.bf16.msra.mxu0 0
      %689 = vmatprep.subr.bf16.mxu0 0
      %690 = vmatpush1.bf16.msra.mxu0 0
      %691 = vmatprep.subr.bf16.mxu0 0
      %692 = vmatpush1.bf16.msra.mxu0 0
      %693 = vmatprep.subr.bf16.mxu0 0
      %694 = vmatpush1.bf16.msra.mxu0 0
      %695 = vmatprep.subr.bf16.mxu0 0
      %696 = vmatpush1.bf16.msra.mxu0 0
      %697 = vmatprep.subr.bf16.mxu0 0
      %698 = vmatpush1.bf16.msra.mxu0 %v640
      %699 = vmatprep.subr.bf16.mxu0 0
      %700 = vmatpush2.bf16.msra.mxu0 0
      %701 = vmatprep.subr.bf16.mxu0 0
      %702 = vmatpush2.bf16.msra.mxu0 0
      %703 = vmatprep.subr.bf16.mxu0 0
      %704 = vmatpush2.bf16.msra.mxu0 0
      %705 = vmatprep.subr.bf16.mxu0 0
      %706 = vmatpush2.bf16.msra.mxu0 0
      %707 = vmatprep.subr.bf16.mxu0 0
      %708 = vmatpush2.bf16.msra.mxu0 0
      %709 = vmatprep.subr.bf16.mxu0 0
      %710 = vmatpush2.bf16.msra.mxu0 0
      %711 = vmatprep.subr.bf16.mxu0 0
      %712 = vmatpush2.bf16.msra.mxu0 0
      %713 = vmatprep.subr.bf16.mxu0 0
      %714 = vmatpush2.bf16.msra.mxu0 0
      %715 = vmatprep.mubr.bf16.mxu0 0
      %716 = vmatmul.mubr.bf16.gmra.mxu0 %v631
      %v717 = vpop.f32.mrf.mxu0
      %v718 = vadd.f32 0.0, %v717
      %v719 = vpop.f32.mrf.mxu0
      %v720 = vpop.f32.mrf.mxu0
      %v721 = vpop.f32.mrf.mxu0
      %722 = vdwg.mxu0
      %v723 = vadd.f32 %v594, %v677
      %v724 = vadd.f32 %v595, %v679
      %v725 = vadd.f32 %v596, %v718
      %s726 = scalar_lea.vmem %s213, 16
      %v727 = vld [vmem:[%s726] sm:$0xf]
      %v728 = vld [vmem:[%s209] sm:$0xff]
      %v730 = vcombine.high %v728, %v728
      %v732 = vunpack.c.l.s4 1983009808
      %v733 = vunpack.c.0.s8 %v732
      %v734 = vlaneseq
      %v735 = vshrl.u32 %v734, 7
      %v736 = vsub.s32 %v733, %v735
      %v737 = vrot.slane %v728, %v736
      %v739 = vunpack.c.l.s4 1983009808
      %v740 = vunpack.c.0.s8 %v739
      %v741 = vlaneseq
      %v742 = vshrl.u32 %v741, 7
      %v743 = vsub.s32 %v740, %v742
      %v744 = vrot.slane %v730, %v743
      %v745 = vcombine.high %v737, %v737
      %v746 = vcombine.high %v744, %v744
      %747 = vrot.lane.b32.xlu0 %v737, 109
      %v748 = vpop.permute.xlu0 %747
      %749 = vrot.lane.b32.xlu0 %v745, 109
      %v750 = vpop.permute.xlu0 %749
      %751 = vrot.lane.b32.xlu0 %v744, 109
      %v752 = vpop.permute.xlu0 %751
      %753 = vrot.lane.b32.xlu0 %v746, 109
      %v754 = vpop.permute.xlu0 %753
      %vm755 = vcmask 891904
      %v756 = vsel %vm755, %v748, %v750
      %v757 = vsel %vm755, %v750, %v752
      %v758 = vsel %vm755, %v752, %v754
      %v760 = vsel %vm263, %v727, 0
      %v763 = vsel %vm267, %v756, 0
      %v766 = vsel %vm267, %v757, 0
      %v769 = vsel %vm267, %v758, 0
      %771 = vmatprep.subr.bf16.mxu0 0
      %772 = vmatpush1.bf16.msra.mxu0 0
      %773 = vmatprep.subr.bf16.mxu0 0
      %774 = vmatpush1.bf16.msra.mxu0 0
      %775 = vmatprep.subr.bf16.mxu0 0
      %776 = vmatpush1.bf16.msra.mxu0 0
      %777 = vmatprep.subr.bf16.mxu0 0
      %778 = vmatpush1.bf16.msra.mxu0 0
      %779 = vmatprep.subr.bf16.mxu0 0
      %780 = vmatpush1.bf16.msra.mxu0 0
      %781 = vmatprep.subr.bf16.mxu0 0
      %782 = vmatpush1.bf16.msra.mxu0 0
      %783 = vmatprep.subr.bf16.mxu0 0
      %784 = vmatpush1.bf16.msra.mxu0 0
      %785 = vmatprep.subr.bf16.mxu0 %v766
      %786 = vmatpush1.bf16.msra.mxu0 %v763
      %787 = vmatprep.subr.bf16.mxu0 0
      %788 = vmatpush2.bf16.msra.mxu0 0
      %789 = vmatprep.subr.bf16.mxu0 0
      %790 = vmatpush2.bf16.msra.mxu0 0
      %791 = vmatprep.subr.bf16.mxu0 0
      %792 = vmatpush2.bf16.msra.mxu0 0
      %793 = vmatprep.subr.bf16.mxu0 0
      %794 = vmatpush2.bf16.msra.mxu0 0
      %795 = vmatprep.subr.bf16.mxu0 0
      %796 = vmatpush2.bf16.msra.mxu0 0
      %797 = vmatprep.subr.bf16.mxu0 0
      %798 = vmatpush2.bf16.msra.mxu0 0
      %799 = vmatprep.subr.bf16.mxu0 0
      %800 = vmatpush2.bf16.msra.mxu0 0
      %801 = vmatprep.subr.bf16.mxu0 0
      %802 = vmatpush2.bf16.msra.mxu0 0
      %803 = vmatprep.mubr.bf16.mxu0 0
      %804 = vmatmul.mubr.bf16.gmra.mxu0 %v760
      %v805 = vpop.f32.mrf.mxu0
      %v806 = vadd.f32 0.0, %v805
      %v807 = vpop.f32.mrf.mxu0
      %v808 = vadd.f32 0.0, %v807
      %v809 = vpop.f32.mrf.mxu0
      %v810 = vpop.f32.mrf.mxu0
      %811 = vdwg.mxu0
      %812 = vmatprep.subr.bf16.mxu0 0
      %813 = vmatpush1.bf16.msra.mxu0 0
      %814 = vmatprep.subr.bf16.mxu0 0
      %815 = vmatpush1.bf16.msra.mxu0 0
      %816 = vmatprep.subr.bf16.mxu0 0
      %817 = vmatpush1.bf16.msra.mxu0 0
      %818 = vmatprep.subr.bf16.mxu0 0
      %819 = vmatpush1.bf16.msra.mxu0 0
      %820 = vmatprep.subr.bf16.mxu0 0
      %821 = vmatpush1.bf16.msra.mxu0 0
      %822 = vmatprep.subr.bf16.mxu0 0
      %823 = vmatpush1.bf16.msra.mxu0 0
      %824 = vmatprep.subr.bf16.mxu0 0
      %825 = vmatpush1.bf16.msra.mxu0 0
      %826 = vmatprep.subr.bf16.mxu0 0
      %827 = vmatpush1.bf16.msra.mxu0 %v769
      %828 = vmatprep.subr.bf16.mxu0 0
      %829 = vmatpush2.bf16.msra.mxu0 0
      %830 = vmatprep.subr.bf16.mxu0 0
      %831 = vmatpush2.bf16.msra.mxu0 0
      %832 = vmatprep.subr.bf16.mxu0 0
      %833 = vmatpush2.bf16.msra.mxu0 0
      %834 = vmatprep.subr.bf16.mxu0 0
      %835 = vmatpush2.bf16.msra.mxu0 0
      %836 = vmatprep.subr.bf16.mxu0 0
      %837 = vmatpush2.bf16.msra.mxu0 0
      %838 = vmatprep.subr.bf16.mxu0 0
      %839 = vmatpush2.bf16.msra.mxu0 0
      %840 = vmatprep.subr.bf16.mxu0 0
      %841 = vmatpush2.bf16.msra.mxu0 0
      %842 = vmatprep.subr.bf16.mxu0 0
      %843 = vmatpush2.bf16.msra.mxu0 0
      %844 = vmatprep.mubr.bf16.mxu0 0
      %845 = vmatmul.mubr.bf16.gmra.mxu0 %v760
      %v846 = vpop.f32.mrf.mxu0
      %v847 = vadd.f32 0.0, %v846
      %v848 = vpop.f32.mrf.mxu0
      %v849 = vpop.f32.mrf.mxu0
      %v850 = vpop.f32.mrf.mxu0
      %851 = vdwg.mxu0
      %v852 = vadd.f32 %v723, %v806
      %v853 = vadd.f32 %v724, %v808
      %v854 = vadd.f32 %v725, %v847
      %s855 = scalar_lea.vmem %s213, 20
      %v856 = vld [vmem:[%s855] sm:$0xf]
      %v857 = vld [vmem:[%s209] sm:$0xff]
      %v859 = vcombine.high %v857, %v857
      %v861 = vunpack.c.l.s4 1983009808
      %v862 = vunpack.c.0.s8 %v861
      %v863 = vlaneseq
      %v864 = vshrl.u32 %v863, 7
      %v865 = vsub.s32 %v862, %v864
      %v866 = vrot.slane %v857, %v865
      %v868 = vunpack.c.l.s4 1983009808
      %v869 = vunpack.c.0.s8 %v868
      %v870 = vlaneseq
      %v871 = vshrl.u32 %v870, 7
      %v872 = vsub.s32 %v869, %v871
      %v873 = vrot.slane %v859, %v872
      %v874 = vcombine.high %v866, %v866
      %v875 = vcombine.high %v873, %v873
      %876 = vrot.lane.b32.xlu0 %v866, 108
      %v877 = vpop.permute.xlu0 %876
      %878 = vrot.lane.b32.xlu0 %v874, 108
      %v879 = vpop.permute.xlu0 %878
      %880 = vrot.lane.b32.xlu0 %v873, 108
      %v881 = vpop.permute.xlu0 %880
      %882 = vrot.lane.b32.xlu0 %v875, 108
      %v883 = vpop.permute.xlu0 %882
      %vm884 = vcmask 883712
      %v885 = vsel %vm884, %v877, %v879
      %v886 = vsel %vm884, %v879, %v881
      %v887 = vsel %vm884, %v881, %v883
      %v889 = vsel %vm263, %v856, 0
      %v892 = vsel %vm267, %v885, 0
      %v895 = vsel %vm267, %v886, 0
      %v898 = vsel %vm267, %v887, 0
      %900 = vmatprep.subr.bf16.mxu0 0
      %901 = vmatpush1.bf16.msra.mxu0 0
      %902 = vmatprep.subr.bf16.mxu0 0
      %903 = vmatpush1.bf16.msra.mxu0 0
      %904 = vmatprep.subr.bf16.mxu0 0
      %905 = vmatpush1.bf16.msra.mxu0 0
      %906 = vmatprep.subr.bf16.mxu0 0
      %907 = vmatpush1.bf16.msra.mxu0 0
      %908 = vmatprep.subr.bf16.mxu0 0
      %909 = vmatpush1.bf16.msra.mxu0 0
      %910 = vmatprep.subr.bf16.mxu0 0
      %911 = vmatpush1.bf16.msra.mxu0 0
      %912 = vmatprep.subr.bf16.mxu0 0
      %913 = vmatpush1.bf16.msra.mxu0 0
      %914 = vmatprep.subr.bf16.mxu0 %v895
      %915 = vmatpush1.bf16.msra.mxu0 %v892
      %916 = vmatprep.subr.bf16.mxu0 0
      %917 = vmatpush2.bf16.msra.mxu0 0
      %918 = vmatprep.subr.bf16.mxu0 0
      %919 = vmatpush2.bf16.msra.mxu0 0
      %920 = vmatprep.subr.bf16.mxu0 0
      %921 = vmatpush2.bf16.msra.mxu0 0
      %922 = vmatprep.subr.bf16.mxu0 0
      %923 = vmatpush2.bf16.msra.mxu0 0
      %924 = vmatprep.subr.bf16.mxu0 0
      %925 = vmatpush2.bf16.msra.mxu0 0
      %926 = vmatprep.subr.bf16.mxu0 0
      %927 = vmatpush2.bf16.msra.mxu0 0
      %928 = vmatprep.subr.bf16.mxu0 0
      %929 = vmatpush2.bf16.msra.mxu0 0
      %930 = vmatprep.subr.bf16.mxu0 0
      %931 = vmatpush2.bf16.msra.mxu0 0
      %932 = vmatprep.mubr.bf16.mxu0 0
      %933 = vmatmul.mubr.bf16.gmra.mxu0 %v889
      %v934 = vpop.f32.mrf.mxu0
      %v935 = vadd.f32 0.0, %v934
      %v936 = vpop.f32.mrf.mxu0
      %v937 = vadd.f32 0.0, %v936
      %v938 = vpop.f32.mrf.mxu0
      %v939 = vpop.f32.mrf.mxu0
      %940 = vdwg.mxu0
      %941 = vmatprep.subr.bf16.mxu0 0
      %942 = vmatpush1.bf16.msra.mxu0 0
      %943 = vmatprep.subr.bf16.mxu0 0
      %944 = vmatpush1.bf16.msra.mxu0 0
      %945 = vmatprep.subr.bf16.mxu0 0
      %946 = vmatpush1.bf16.msra.mxu0 0
      %947 = vmatprep.subr.bf16.mxu0 0
      %948 = vmatpush1.bf16.msra.mxu0 0
      %949 = vmatprep.subr.bf16.mxu0 0
      %950 = vmatpush1.bf16.msra.mxu0 0
      %951 = vmatprep.subr.bf16.mxu0 0
      %952 = vmatpush1.bf16.msra.mxu0 0
      %953 = vmatprep.subr.bf16.mxu0 0
      %954 = vmatpush1.bf16.msra.mxu0 0
      %955 = vmatprep.subr.bf16.mxu0 0
      %956 = vmatpush1.bf16.msra.mxu0 %v898
      %957 = vmatprep.subr.bf16.mxu0 0
      %958 = vmatpush2.bf16.msra.mxu0 0
      %959 = vmatprep.subr.bf16.mxu0 0
      %960 = vmatpush2.bf16.msra.mxu0 0
      %961 = vmatprep.subr.bf16.mxu0 0
      %962 = vmatpush2.bf16.msra.mxu0 0
      %963 = vmatprep.subr.bf16.mxu0 0
      %964 = vmatpush2.bf16.msra.mxu0 0
      %965 = vmatprep.subr.bf16.mxu0 0
      %966 = vmatpush2.bf16.msra.mxu0 0
      %967 = vmatprep.subr.bf16.mxu0 0
      %968 = vmatpush2.bf16.msra.mxu0 0
      %969 = vmatprep.subr.bf16.mxu0 0
      %970 = vmatpush2.bf16.msra.mxu0 0
      %971 = vmatprep.subr.bf16.mxu0 0
      %972 = vmatpush2.bf16.msra.mxu0 0
      %973 = vmatprep.mubr.bf16.mxu0 0
      %974 = vmatmul.mubr.bf16.gmra.mxu0 %v889
      %v975 = vpop.f32.mrf.mxu0
      %v976 = vadd.f32 0.0, %v975
      %v977 = vpop.f32.mrf.mxu0
      %v978 = vpop.f32.mrf.mxu0
      %v979 = vpop.f32.mrf.mxu0
      %980 = vdwg.mxu0
      %v981 = vadd.f32 %v852, %v935
      %v982 = vadd.f32 %v853, %v937
      %v983 = vadd.f32 %v854, %v976
      %s984 = scalar_lea.vmem %s213, 24
      %v985 = vld [vmem:[%s984] sm:$0xf]
      %v986 = vld [vmem:[%s209] sm:$0xff]
      %v988 = vcombine.high %v986, %v986
      %v990 = vunpack.c.l.s4 1983009808
      %v991 = vunpack.c.0.s8 %v990
      %v992 = vlaneseq
      %v993 = vshrl.u32 %v992, 7
      %v994 = vsub.s32 %v991, %v993
      %v995 = vrot.slane %v986, %v994
      %v997 = vunpack.c.l.s4 1983009808
      %v998 = vunpack.c.0.s8 %v997
      %v999 = vlaneseq
      %v1000 = vshrl.u32 %v999, 7
      %v1001 = vsub.s32 %v998, %v1000
      %v1002 = vrot.slane %v988, %v1001
      %v1003 = vcombine.high %v995, %v995
      %v1004 = vcombine.high %v1002, %v1002
      %1005 = vrot.lane.b32.xlu0 %v995, 92
      %v1006 = vpop.permute.xlu0 %1005
      %1007 = vrot.lane.b32.xlu0 %v1003, 92
      %v1008 = vpop.permute.xlu0 %1007
      %1009 = vrot.lane.b32.xlu0 %v1002, 92
      %v1010 = vpop.permute.xlu0 %1009
      %1011 = vrot.lane.b32.xlu0 %v1004, 92
      %v1012 = vpop.permute.xlu0 %1011
      %vm1013 = vcmask 752640
      %v1014 = vsel %vm1013, %v1006, %v1008
      %v1015 = vsel %vm1013, %v1008, %v1010
      %v1016 = vsel %vm1013, %v1010, %v1012
      %v1018 = vsel %vm263, %v985, 0
      %v1021 = vsel %vm267, %v1014, 0
      %v1024 = vsel %vm267, %v1015, 0
      %v1027 = vsel %vm267, %v1016, 0
      %1029 = vmatprep.subr.bf16.mxu0 0
      %1030 = vmatpush1.bf16.msra.mxu0 0
      %1031 = vmatprep.subr.bf16.mxu0 0
      %1032 = vmatpush1.bf16.msra.mxu0 0
      %1033 = vmatprep.subr.bf16.mxu0 0
      %1034 = vmatpush1.bf16.msra.mxu0 0
      %1035 = vmatprep.subr.bf16.mxu0 0
      %1036 = vmatpush1.bf16.msra.mxu0 0
      %1037 = vmatprep.subr.bf16.mxu0 0
      %1038 = vmatpush1.bf16.msra.mxu0 0
      %1039 = vmatprep.subr.bf16.mxu0 0
      %1040 = vmatpush1.bf16.msra.mxu0 0
      %1041 = vmatprep.subr.bf16.mxu0 0
      %1042 = vmatpush1.bf16.msra.mxu0 0
      %1043 = vmatprep.subr.bf16.mxu0 %v1024
      %1044 = vmatpush1.bf16.msra.mxu0 %v1021
      %1045 = vmatprep.subr.bf16.mxu0 0
      %1046 = vmatpush2.bf16.msra.mxu0 0
      %1047 = vmatprep.subr.bf16.mxu0 0
      %1048 = vmatpush2.bf16.msra.mxu0 0
      %1049 = vmatprep.subr.bf16.mxu0 0
      %1050 = vmatpush2.bf16.msra.mxu0 0
      %1051 = vmatprep.subr.bf16.mxu0 0
      %1052 = vmatpush2.bf16.msra.mxu0 0
      %1053 = vmatprep.subr.bf16.mxu0 0
      %1054 = vmatpush2.bf16.msra.mxu0 0
      %1055 = vmatprep.subr.bf16.mxu0 0
      %1056 = vmatpush2.bf16.msra.mxu0 0
      %1057 = vmatprep.subr.bf16.mxu0 0
      %1058 = vmatpush2.bf16.msra.mxu0 0
      %1059 = vmatprep.subr.bf16.mxu0 0
      %1060 = vmatpush2.bf16.msra.mxu0 0
      %1061 = vmatprep.mubr.bf16.mxu0 0
      %1062 = vmatmul.mubr.bf16.gmra.mxu0 %v1018
      %v1063 = vpop.f32.mrf.mxu0
      %v1064 = vadd.f32 0.0, %v1063
      %v1065 = vpop.f32.mrf.mxu0
      %v1066 = vadd.f32 0.0, %v1065
      %v1067 = vpop.f32.mrf.mxu0
      %v1068 = vpop.f32.mrf.mxu0
      %1069 = vdwg.mxu0
      %1070 = vmatprep.subr.bf16.mxu0 0
      %1071 = vmatpush1.bf16.msra.mxu0 0
      %1072 = vmatprep.subr.bf16.mxu0 0
      %1073 = vmatpush1.bf16.msra.mxu0 0
      %1074 = vmatprep.subr.bf16.mxu0 0
      %1075 = vmatpush1.bf16.msra.mxu0 0
      %1076 = vmatprep.subr.bf16.mxu0 0
      %1077 = vmatpush1.bf16.msra.mxu0 0
      %1078 = vmatprep.subr.bf16.mxu0 0
      %1079 = vmatpush1.bf16.msra.mxu0 0
      %1080 = vmatprep.subr.bf16.mxu0 0
      %1081 = vmatpush1.bf16.msra.mxu0 0
      %1082 = vmatprep.subr.bf16.mxu0 0
      %1083 = vmatpush1.bf16.msra.mxu0 0
      %1084 = vmatprep.subr.bf16.mxu0 0
      %1085 = vmatpush1.bf16.msra.mxu0 %v1027
      %1086 = vmatprep.subr.bf16.mxu0 0
      %1087 = vmatpush2.bf16.msra.mxu0 0
      %1088 = vmatprep.subr.bf16.mxu0 0
      %1089 = vmatpush2.bf16.msra.mxu0 0
      %1090 = vmatprep.subr.bf16.mxu0 0
      %1091 = vmatpush2.bf16.msra.mxu0 0
      %1092 = vmatprep.subr.bf16.mxu0 0
      %1093 = vmatpush2.bf16.msra.mxu0 0
      %1094 = vmatprep.subr.bf16.mxu0 0
      %1095 = vmatpush2.bf16.msra.mxu0 0
      %1096 = vmatprep.subr.bf16.mxu0 0
      %1097 = vmatpush2.bf16.msra.mxu0 0
      %1098 = vmatprep.subr.bf16.mxu0 0
      %1099 = vmatpush2.bf16.msra.mxu0 0
      %1100 = vmatprep.subr.bf16.mxu0 0
      %1101 = vmatpush2.bf16.msra.mxu0 0
      %1102 = vmatprep.mubr.bf16.mxu0 0
      %1103 = vmatmul.mubr.bf16.gmra.mxu0 %v1018
      %v1104 = vpop.f32.mrf.mxu0
      %v1105 = vadd.f32 0.0, %v1104
      %v1106 = vpop.f32.mrf.mxu0
      %v1107 = vpop.f32.mrf.mxu0
      %v1108 = vpop.f32.mrf.mxu0
      %1109 = vdwg.mxu0
      %v1110 = vadd.f32 %v981, %v1064
      %v1111 = vadd.f32 %v982, %v1066
      %v1112 = vadd.f32 %v983, %v1105
      %s1113 = scalar_lea.vmem %s213, 28
      %v1114 = vld [vmem:[%s1113] sm:$0xf]
      %v1115 = vld [vmem:[%s209] sm:$0xff]
      %v1117 = vcombine.high %v1115, %v1115
      %v1119 = vunpack.c.l.s4 1983009808
      %v1120 = vunpack.c.0.s8 %v1119
      %v1121 = vlaneseq
      %v1122 = vshrl.u32 %v1121, 7
      %v1123 = vsub.s32 %v1120, %v1122
      %v1124 = vrot.slane %v1115, %v1123
      %v1126 = vunpack.c.l.s4 1983009808
      %v1127 = vunpack.c.0.s8 %v1126
      %v1128 = vlaneseq
      %v1129 = vshrl.u32 %v1128, 7
      %v1130 = vsub.s32 %v1127, %v1129
      %v1131 = vrot.slane %v1117, %v1130
      %v1132 = vcombine.high %v1124, %v1124
      %v1133 = vcombine.high %v1131, %v1131
      %1134 = vrot.lane.b32.xlu0 %v1124, 91
      %v1135 = vpop.permute.xlu0 %1134
      %1136 = vrot.lane.b32.xlu0 %v1132, 91
      %v1137 = vpop.permute.xlu0 %1136
      %1138 = vrot.lane.b32.xlu0 %v1131, 91
      %v1139 = vpop.permute.xlu0 %1138
      %1140 = vrot.lane.b32.xlu0 %v1133, 91
      %v1141 = vpop.permute.xlu0 %1140
      %vm1142 = vcmask 744448
      %v1143 = vsel %vm1142, %v1135, %v1137
      %v1144 = vsel %vm1142, %v1137, %v1139
      %v1145 = vsel %vm1142, %v1139, %v1141
      %v1147 = vsel %vm263, %v1114, 0
      %v1150 = vsel %vm267, %v1143, 0
      %v1153 = vsel %vm267, %v1144, 0
      %v1156 = vsel %vm267, %v1145, 0
      %1158 = vmatprep.subr.bf16.mxu0 0
      %1159 = vmatpush1.bf16.msra.mxu0 0
      %1160 = vmatprep.subr.bf16.mxu0 0
      %1161 = vmatpush1.bf16.msra.mxu0 0
      %1162 = vmatprep.subr.bf16.mxu0 0
      %1163 = vmatpush1.bf16.msra.mxu0 0
      %1164 = vmatprep.subr.bf16.mxu0 0
      %1165 = vmatpush1.bf16.msra.mxu0 0
      %1166 = vmatprep.subr.bf16.mxu0 0
      %1167 = vmatpush1.bf16.msra.mxu0 0
      %1168 = vmatprep.subr.bf16.mxu0 0
      %1169 = vmatpush1.bf16.msra.mxu0 0
      %1170 = vmatprep.subr.bf16.mxu0 0
      %1171 = vmatpush1.bf16.msra.mxu0 0
      %1172 = vmatprep.subr.bf16.mxu0 %v1153
      %1173 = vmatpush1.bf16.msra.mxu0 %v1150
      %1174 = vmatprep.subr.bf16.mxu0 0
      %1175 = vmatpush2.bf16.msra.mxu0 0
      %1176 = vmatprep.subr.bf16.mxu0 0
      %1177 = vmatpush2.bf16.msra.mxu0 0
      %1178 = vmatprep.subr.bf16.mxu0 0
      %1179 = vmatpush2.bf16.msra.mxu0 0
      %1180 = vmatprep.subr.bf16.mxu0 0
      %1181 = vmatpush2.bf16.msra.mxu0 0
      %1182 = vmatprep.subr.bf16.mxu0 0
      %1183 = vmatpush2.bf16.msra.mxu0 0
      %1184 = vmatprep.subr.bf16.mxu0 0
      %1185 = vmatpush2.bf16.msra.mxu0 0
      %1186 = vmatprep.subr.bf16.mxu0 0
      %1187 = vmatpush2.bf16.msra.mxu0 0
      %1188 = vmatprep.subr.bf16.mxu0 0
      %1189 = vmatpush2.bf16.msra.mxu0 0
      %1190 = vmatprep.mubr.bf16.mxu0 0
      %1191 = vmatmul.mubr.bf16.gmra.mxu0 %v1147
      %v1192 = vpop.f32.mrf.mxu0
      %v1193 = vadd.f32 0.0, %v1192
      %v1194 = vpop.f32.mrf.mxu0
      %v1195 = vadd.f32 0.0, %v1194
      %v1196 = vpop.f32.mrf.mxu0
      %v1197 = vpop.f32.mrf.mxu0
      %1198 = vdwg.mxu0
      %1199 = vmatprep.subr.bf16.mxu0 0
      %1200 = vmatpush1.bf16.msra.mxu0 0
      %1201 = vmatprep.subr.bf16.mxu0 0
      %1202 = vmatpush1.bf16.msra.mxu0 0
      %1203 = vmatprep.subr.bf16.mxu0 0
      %1204 = vmatpush1.bf16.msra.mxu0 0
      %1205 = vmatprep.subr.bf16.mxu0 0
      %1206 = vmatpush1.bf16.msra.mxu0 0
      %1207 = vmatprep.subr.bf16.mxu0 0
      %1208 = vmatpush1.bf16.msra.mxu0 0
      %1209 = vmatprep.subr.bf16.mxu0 0
      %1210 = vmatpush1.bf16.msra.mxu0 0
      %1211 = vmatprep.subr.bf16.mxu0 0
      %1212 = vmatpush1.bf16.msra.mxu0 0
      %1213 = vmatprep.subr.bf16.mxu0 0
      %1214 = vmatpush1.bf16.msra.mxu0 %v1156
      %1215 = vmatprep.subr.bf16.mxu0 0
      %1216 = vmatpush2.bf16.msra.mxu0 0
      %1217 = vmatprep.subr.bf16.mxu0 0
      %1218 = vmatpush2.bf16.msra.mxu0 0
      %1219 = vmatprep.subr.bf16.mxu0 0
      %1220 = vmatpush2.bf16.msra.mxu0 0
      %1221 = vmatprep.subr.bf16.mxu0 0
      %1222 = vmatpush2.bf16.msra.mxu0 0
      %1223 = vmatprep.subr.bf16.mxu0 0
      %1224 = vmatpush2.bf16.msra.mxu0 0
      %1225 = vmatprep.subr.bf16.mxu0 0
      %1226 = vmatpush2.bf16.msra.mxu0 0
      %1227 = vmatprep.subr.bf16.mxu0 0
      %1228 = vmatpush2.bf16.msra.mxu0 0
      %1229 = vmatprep.subr.bf16.mxu0 0
      %1230 = vmatpush2.bf16.msra.mxu0 0
      %1231 = vmatprep.mubr.bf16.mxu0 0
      %1232 = vmatmul.mubr.bf16.gmra.mxu0 %v1147
      %v1233 = vpop.f32.mrf.mxu0
      %v1234 = vadd.f32 0.0, %v1233
      %v1235 = vpop.f32.mrf.mxu0
      %v1236 = vpop.f32.mrf.mxu0
      %v1237 = vpop.f32.mrf.mxu0
      %1238 = vdwg.mxu0
      %v1239 = vadd.f32 %v1110, %v1193
      %v1240 = vadd.f32 %v1111, %v1195
      %v1241 = vadd.f32 %v1112, %v1234
      %s1242 = scalar_lea.vmem %s213, 32
      %v1243 = vld [vmem:[%s1242] sm:$0xf]
      %v1244 = vld [vmem:[%s209] sm:$0xff]
      %v1246 = vcombine.high %v1244, %v1244
      %v1248 = vunpack.c.l.s4 1983009808
      %v1249 = vunpack.c.0.s8 %v1248
      %v1250 = vlaneseq
      %v1251 = vshrl.u32 %v1250, 7
      %v1252 = vsub.s32 %v1249, %v1251
      %v1253 = vrot.slane %v1244, %v1252
      %v1255 = vunpack.c.l.s4 1983009808
      %v1256 = vunpack.c.0.s8 %v1255
      %v1257 = vlaneseq
      %v1258 = vshrl.u32 %v1257, 7
      %v1259 = vsub.s32 %v1256, %v1258
      %v1260 = vrot.slane %v1246, %v1259
      %v1261 = vcombine.high %v1253, %v1253
      %v1262 = vcombine.high %v1260, %v1260
      %1263 = vrot.lane.b32.xlu0 %v1253, 90
      %v1264 = vpop.permute.xlu0 %1263
      %1265 = vrot.lane.b32.xlu0 %v1261, 90
      %v1266 = vpop.permute.xlu0 %1265
      %1267 = vrot.lane.b32.xlu0 %v1260, 90
      %v1268 = vpop.permute.xlu0 %1267
      %1269 = vrot.lane.b32.xlu0 %v1262, 90
      %v1270 = vpop.permute.xlu0 %1269
      %vm1271 = vcmask 736256
      %v1272 = vsel %vm1271, %v1264, %v1266
      %v1273 = vsel %vm1271, %v1266, %v1268
      %v1274 = vsel %vm1271, %v1268, %v1270
      %v1276 = vsel %vm263, %v1243, 0
      %v1279 = vsel %vm267, %v1272, 0
      %v1282 = vsel %vm267, %v1273, 0
      %v1285 = vsel %vm267, %v1274, 0
      %1287 = vmatprep.subr.bf16.mxu0 0
      %1288 = vmatpush1.bf16.msra.mxu0 0
      %1289 = vmatprep.subr.bf16.mxu0 0
      %1290 = vmatpush1.bf16.msra.mxu0 0
      %1291 = vmatprep.subr.bf16.mxu0 0
      %1292 = vmatpush1.bf16.msra.mxu0 0
      %1293 = vmatprep.subr.bf16.mxu0 0
      %1294 = vmatpush1.bf16.msra.mxu0 0
      %1295 = vmatprep.subr.bf16.mxu0 0
      %1296 = vmatpush1.bf16.msra.mxu0 0
      %1297 = vmatprep.subr.bf16.mxu0 0
      %1298 = vmatpush1.bf16.msra.mxu0 0
      %1299 = vmatprep.subr.bf16.mxu0 0
      %1300 = vmatpush1.bf16.msra.mxu0 0
      %1301 = vmatprep.subr.bf16.mxu0 %v1282
      %1302 = vmatpush1.bf16.msra.mxu0 %v1279
      %1303 = vmatprep.subr.bf16.mxu0 0
      %1304 = vmatpush2.bf16.msra.mxu0 0
      %1305 = vmatprep.subr.bf16.mxu0 0
      %1306 = vmatpush2.bf16.msra.mxu0 0
      %1307 = vmatprep.subr.bf16.mxu0 0
      %1308 = vmatpush2.bf16.msra.mxu0 0
      %1309 = vmatprep.subr.bf16.mxu0 0
      %1310 = vmatpush2.bf16.msra.mxu0 0
      %1311 = vmatprep.subr.bf16.mxu0 0
      %1312 = vmatpush2.bf16.msra.mxu0 0
      %1313 = vmatprep.subr.bf16.mxu0 0
      %1314 = vmatpush2.bf16.msra.mxu0 0
      %1315 = vmatprep.subr.bf16.mxu0 0
      %1316 = vmatpush2.bf16.msra.mxu0 0
      %1317 = vmatprep.subr.bf16.mxu0 0
      %1318 = vmatpush2.bf16.msra.mxu0 0
      %1319 = vmatprep.mubr.bf16.mxu0 0
      %1320 = vmatmul.mubr.bf16.gmra.mxu0 %v1276
      %v1321 = vpop.f32.mrf.mxu0
      %v1322 = vadd.f32 0.0, %v1321
      %v1323 = vpop.f32.mrf.mxu0
      %v1324 = vadd.f32 0.0, %v1323
      %v1325 = vpop.f32.mrf.mxu0
      %v1326 = vpop.f32.mrf.mxu0
      %1327 = vdwg.mxu0
      %1328 = vmatprep.subr.bf16.mxu0 0
      %1329 = vmatpush1.bf16.msra.mxu0 0
      %1330 = vmatprep.subr.bf16.mxu0 0
      %1331 = vmatpush1.bf16.msra.mxu0 0
      %1332 = vmatprep.subr.bf16.mxu0 0
      %1333 = vmatpush1.bf16.msra.mxu0 0
      %1334 = vmatprep.subr.bf16.mxu0 0
      %1335 = vmatpush1.bf16.msra.mxu0 0
      %1336 = vmatprep.subr.bf16.mxu0 0
      %1337 = vmatpush1.bf16.msra.mxu0 0
      %1338 = vmatprep.subr.bf16.mxu0 0
      %1339 = vmatpush1.bf16.msra.mxu0 0
      %1340 = vmatprep.subr.bf16.mxu0 0
      %1341 = vmatpush1.bf16.msra.mxu0 0
      %1342 = vmatprep.subr.bf16.mxu0 0
      %1343 = vmatpush1.bf16.msra.mxu0 %v1285
      %1344 = vmatprep.subr.bf16.mxu0 0
      %1345 = vmatpush2.bf16.msra.mxu0 0
      %1346 = vmatprep.subr.bf16.mxu0 0
      %1347 = vmatpush2.bf16.msra.mxu0 0
      %1348 = vmatprep.subr.bf16.mxu0 0
      %1349 = vmatpush2.bf16.msra.mxu0 0
      %1350 = vmatprep.subr.bf16.mxu0 0
      %1351 = vmatpush2.bf16.msra.mxu0 0
      %1352 = vmatprep.subr.bf16.mxu0 0
      %1353 = vmatpush2.bf16.msra.mxu0 0
      %1354 = vmatprep.subr.bf16.mxu0 0
      %1355 = vmatpush2.bf16.msra.mxu0 0
      %1356 = vmatprep.subr.bf16.mxu0 0
      %1357 = vmatpush2.bf16.msra.mxu0 0
      %1358 = vmatprep.subr.bf16.mxu0 0
      %1359 = vmatpush2.bf16.msra.mxu0 0
      %1360 = vmatprep.mubr.bf16.mxu0 0
      %1361 = vmatmul.mubr.bf16.gmra.mxu0 %v1276
      %v1362 = vpop.f32.mrf.mxu0
      %v1363 = vadd.f32 0.0, %v1362
      %v1364 = vpop.f32.mrf.mxu0
      %v1365 = vpop.f32.mrf.mxu0
      %v1366 = vpop.f32.mrf.mxu0
      %1367 = vdwg.mxu0
      %v1368 = vadd.f32 %v1239, %v1322
      %v1369 = vadd.f32 %v1240, %v1324
      %v1370 = vadd.f32 %v1241, %v1363
      %v1371 = vld [vmem:[%s217] sm:$0xff]
      %1373 = vset.pattern.permute.xlu0 0
      %1374 = vperm.xlu0 %1373, %v1371
      %v1375 = vpop.permute.xlu0 %1374
      %v1377 = vadd.f32 %v1368, %v1375
      %v1378 = vadd.f32 %v1369, %v1375
      %v1379 = vadd.f32 %v1370, %v1375
      %1380 = vst [vmem:[%s226] sm:$0xff] %v1377
      %1381 = vst [vmem:[%s226 + $0x8] sm:$0xff] %v1378
      %1382 = vst [vmem:[%s226 + $0x10] sm:$0xff] %v1379
      %p1383 = scmp.lt.s32.totalorder %s18, 1
      %s1384 = scalar_select %p1383, %s18, 1
      %p1385 = scmp.lt.s32.totalorder %s19, 0
      %s1386 = scalar_select %p1385, %s19, 0
      %s1387 = smul.addr %s1386, 3
      %s1388 = smul.addr %s1384, 3
      %s1389 = sadd.s32 %s1387, %s1388
      %s1390 = smul.addr %s1389, 8
      %s1391 = scalar_lea.vmem %s3, %s1390
      // Predicated region
      $region33: #{constolution2d_forward.1} parent=31 // pred_check
        %p1392 = pneg %p124
      $region34: #{constolution2d_forward.1} parent=31 // pred_check_branch
        %1394 = sbr.rel (%p1392) target = $region36
      $region35: #{constolution2d_forward.1} parent=31 // pred_region
        _
      $region36: #{constolution2d_forward.1} parent=31 // pred_fallthru
        _
    $region32: #{constolution2d_forward.1} parent=5 // pred_fallthru
      _
    %p1395 = scmp.le.s32.totalorder 2, %s9
    // Predicated region
    $region37: #{constolution2d_forward.1} parent=5 // pred_check
      %p1396 = pneg %p1395
    $region38: #{constolution2d_forward.1} parent=5 // pred_check_branch
      %1398 = sbr.rel (%p1396) target = $region40
    $region39: #{constolution2d_forward.1} parent=5 // pred_region
      %s1399 = ssub.s32 %s9, 2
      // Predicated region
      $region41: #{constolution2d_forward.1} parent=39 // pred_check
        %p1400 = pneg %p130
      $region42: #{constolution2d_forward.1} parent=39 // pred_check_branch
        %1402 = sbr.rel (%p1400) target = $region44
      $region43: #{constolution2d_forward.1} parent=39 // pred_region
        %p1403 = scmp.lt.s32.totalorder %s20, 1
        %s1404 = scalar_select %p1403, %s20, 1
        %p1405 = scmp.lt.s32.totalorder %s21, 0
        %s1406 = scalar_select %p1405, %s21, 0
        %s1407 = smul.addr %s1406, 3
        %s1408 = smul.addr %s1404, 3
        %s1409 = sadd.s32 %s1407, %s1408
        %s1410 = smul.addr %s1409, 8
        %s1411 = scalar_lea.vmem %s3, %s1410
      $region44: #{constolution2d_forward.1} parent=39 // pred_fallthru
        _
    $region40: #{constolution2d_forward.1} parent=5 // pred_fallthru
      _
  $region6: #{constolution2d_forward.1} parent=0 // loop_footer
    %s13 = sadd.s32 1, %s9
  $region7: #{constolution2d_forward.1} parent=0 // loop_footer_branch
    %8 = sbr.rel target = $region3
  $region8: #{constolution2d_forward.1} parent=0 // loop_exit
    _

</llo_original>
